<compile_context>
chip_gen: v6e
topology: v6e:2x2x1
jax: 0.10.0
libtpu: 0.0.40
codegen_flags: <defaults>
</compile_context>

<pallas_src>
import math
from functools import partial

import jax
import jax.numpy as jnp
import numpy as np
from jax import lax
from jax.experimental import pallas as pl
from jax.experimental.pallas import tpu as pltpu


_VMEM_BUDGET = 6 * 1024 * 1024   # accounted bytes per grid step (double-buffered
                                 # in+out plus one intermediate); safe under the
                                 # 16 MiB scoped-VMEM default on v5e.
_MIN_GRID_STEPS = 16             # >= 8 steps per TensorCore on megacore parts.


def _largest_divisor_leq(n, k):
    """Largest divisor of n that is <= k (and >= 1)."""
    k = int(max(1, min(n, k)))
    while n % k:
        k -= 1
    return k


# ---------------------------------------------------------------------------
# Primary path: integer scale factors (the standard 2x decoder case).
# Pure data movement: voxel replication, no FLOPs, dtype preserved end-to-end.
# ---------------------------------------------------------------------------
def _nearest_repeat_kernel(x_ref, o_ref, *, sh, sw):
    # x_ref: (1, c_blk, 1, H_in, W_in) ; o_ref: (1, c_blk, 1, out_H, out_W)
    # Depth replication happens in the input index_map (d // sd), not here.
    y = x_ref[0]                                   # (c_blk, 1, H_in, W_in)
    if sw > 1:
        y = jnp.repeat(y, sw, axis=3)              # lane-axis replication
    if sh > 1:
        y = jnp.repeat(y, sh, axis=2)              # sublane-axis replication
    o_ref[0] = y


def _nearest_repeat_fold_kernel(x_ref, o_ref, *, sd, sh, sw):
    # x_ref: (1, c_blk, d_in_blk, H_in, W_in)
    # o_ref: (1, c_blk, d_in_blk*sd, out_H*out_W)   (lane-dense folded HW)
    x = x_ref[0]                                   # (c_blk, d_in_blk, H_in, W_in)
    c_blk, d_in, h_in, w_in = x.shape
    y = x
    if sw > 1:
        y = jnp.repeat(y, sw, axis=3)
    if sh > 1:
        y = jnp.repeat(y, sh, axis=2)
    if sd > 1:
        y = jnp.repeat(y, sd, axis=1)
    # Fold (out_H, out_W) into one lane-dense trailing axis (out_W < 128 here,
    # so unfolded stores would be masked sub-128-lane writes).
    o_ref[0] = y.reshape(c_blk, d_in * sd, h_in * sh * w_in * sw)


def _upsample_nearest_integer(x, out_D, out_H, out_W):
    N, C, D_in, H_in, W_in = x.shape
    sd, sh, sw = out_D // D_in, out_H // H_in, out_W // W_in
    itemsize = jnp.dtype(x.dtype).itemsize

    # --- choose layout / depth tiling -------------------------------------
    fold_hw = out_W < 128
    if fold_hw:
        # Depth block: multiple of 8 (sublane-dense folded block) and of sd
        # (so a whole number of input planes maps to it), dividing out_D.
        g = (sd * 8) // math.gcd(sd, 8)
        d_blk = g if out_D % g == 0 else out_D
        d_in_blk = d_blk // sd
        per_c = (2 * (d_in_blk * H_in * W_in + d_blk * out_H * out_W)
                 + d_blk * out_H * out_W) * itemsize
        if per_c > _VMEM_BUDGET:
            fold_hw = False                       # fall back to per-plane tiling
    if not fold_hw:
        d_blk, d_in_blk = 1, 1
        per_c = (2 * (H_in * W_in + out_H * out_W) + out_H * out_W) * itemsize

    n_d = out_D // d_blk

    # --- channel block: biggest divisor of C fitting the VMEM budget, then
    # shrink until there are enough grid steps to pipeline / shard. ---------
    c_blk = _largest_divisor_leq(C, _VMEM_BUDGET // max(per_c, 1))
    while c_blk > 1 and N * (C // c_blk) * n_d < _MIN_GRID_STEPS:
        c_blk = _largest_divisor_leq(C, c_blk - 1)
    n_c = C // c_blk

    out_elems = N * C * out_D * out_H * out_W
    cost = pl.CostEstimate(flops=0, transcendentals=0,
                           bytes_accessed=int((x.size + out_elems) * itemsize))
    cparams = pltpu.CompilerParams(
        dimension_semantics=("parallel", "parallel", "parallel"))

    if fold_hw:
        out_flat = pl.pallas_call(
            partial(_nearest_repeat_fold_kernel, sd=sd, sh=sh, sw=sw),
            out_shape=jax.ShapeDtypeStruct((N, C, out_D, out_H * out_W), x.dtype),
            grid_spec=pltpu.PrefetchScalarGridSpec(
                num_scalar_prefetch=0,
                grid=(N, n_c, n_d),
                in_specs=[pl.BlockSpec((1, c_blk, d_in_blk, H_in, W_in),
                                       lambda n, c, j: (n, c, j, 0, 0))],
                out_specs=pl.BlockSpec((1, c_blk, d_blk, out_H * out_W),
                                       lambda n, c, j: (n, c, j, 0)),
            ),
            compiler_params=cparams,
            cost_estimate=cost,
        )(x)
        # Contiguous reshape back to NCDHW: pure metadata, free.
        return out_flat.reshape(N, C, out_D, out_H, out_W)

    # Wide case: natural 5-D blocks (trailing dims are full -> always legal,
    # lane-dense since out_W >= 128); depth replication via index_map only.
    return pl.pallas_call(
        partial(_nearest_repeat_kernel, sh=sh, sw=sw),
        out_shape=jax.ShapeDtypeStruct((N, C, out_D, out_H, out_W), x.dtype),
        grid_spec=pltpu.PrefetchScalarGridSpec(
            num_scalar_prefetch=0,
            grid=(N, n_c, out_D),
            in_specs=[pl.BlockSpec((1, c_blk, 1, H_in, W_in),
                                   lambda n, c, d: (n, c, d // sd, 0, 0))],
            out_specs=pl.BlockSpec((1, c_blk, 1, out_H, out_W),
                                   lambda n, c, d: (n, c, d, 0, 0)),
        ),
        compiler_params=cparams,
        cost_estimate=cost,
    )(x)


# ---------------------------------------------------------------------------
# General / fallback path: arbitrary (non-integer) scale factors.
# Exact one-hot selection matmuls, batched over a block of channels per step.
# ---------------------------------------------------------------------------
def _nearest_select_kernel(sel_h_ref, sel_w_ref, x_ref, o_ref):
    x = x_ref[0]                                    # (c_blk, 1, H_in, W_in)
    c_blk, _, h_in, w_in = x.shape
    sel_w = sel_w_ref[...]                          # (W_in, out_W), x.dtype
    sel_h = sel_h_ref[...]                          # (out_H, H_in), x.dtype
    out_w = sel_w.shape[1]
    out_h = sel_h.shape[0]

    # W selection on the MXU: (c_blk*H_in, W_in) @ (W_in, out_W).
    a = jnp.dot(x.reshape(c_blk * h_in, w_in), sel_w,
                preferred_element_type=jnp.float32,
                precision=lax.Precision.HIGHEST)    # (c_blk*H_in, out_W)
    a = a.reshape(c_blk, h_in, out_w)
    # H selection as a batched matmul over the channel block.
    sel_hb = jnp.broadcast_to(sel_h.astype(jnp.float32), (c_blk, out_h, h_in))
    y = lax.dot_general(sel_hb, a,
                        dimension_numbers=(((2,), (1,)), ((0,), (0,))),
                        preferred_element_type=jnp.float32,
                        precision=lax.Precision.HIGHEST)  # (c_blk, out_H, out_W)
    o_ref[0] = y.reshape(c_blk, 1, out_h, out_w).astype(o_ref.dtype)


def _upsample_nearest_general(x, out_D, out_H, out_W):
    N, C, D_in, H_in, W_in = x.shape
    itemsize = jnp.dtype(x.dtype).itemsize

    # One-hot selection matrices in the input dtype (exact: one term per row).
    h_src = (np.arange(out_H) * H_in) // out_H
    w_src = (np.arange(out_W) * W_in) // out_W
    sel_h_np = np.zeros((out_H, H_in), dtype=np.float32)
    sel_h_np[np.arange(out_H), h_src] = 1.0
    sel_w_np = np.zeros((W_in, out_W), dtype=np.float32)
    sel_w_np[w_src, np.arange(out_W)] = 1.0
    sel_h = jnp.asarray(sel_h_np, dtype=x.dtype)
    sel_w = jnp.asarray(sel_w_np, dtype=x.dtype)

    per_c = (2 * (H_in * W_in + out_H * out_W) * itemsize
             + (H_in * out_W + out_H * out_W) * 4)          # f32 intermediates
    c_blk = _largest_divisor_leq(C, _VMEM_BUDGET // max(per_c, 1))
    while c_blk > 1 and N * (C // c_blk) * out_D < _MIN_GRID_STEPS:
        c_blk = _largest_divisor_leq(C, c_blk - 1)
    n_c = C // c_blk

    out_elems = N * C * out_D * out_H * out_W
    flops = 2 * N * C * out_D * (H_in * W_in * out_W + out_H * H_in * out_W)
    cost = pl.CostEstimate(flops=int(flops), transcendentals=0,
                           bytes_accessed=int((x.size + out_elems) * itemsize))

    return pl.pallas_call(
        _nearest_select_kernel,
        out_shape=jax.ShapeDtypeStruct((N, C, out_D, out_H, out_W), x.dtype),
        grid_spec=pltpu.PrefetchScalarGridSpec(
            num_scalar_prefetch=0,
            grid=(N, n_c, out_D),
            in_specs=[
                pl.BlockSpec((out_H, H_in), lambda n, c, d: (0, 0)),
                pl.BlockSpec((W_in, out_W), lambda n, c, d: (0, 0)),
                # depth-axis nearest gather expressed via the index_map
                pl.BlockSpec((1, c_blk, 1, H_in, W_in),
                             lambda n, c, d: (n, c, (d * D_in) // out_D, 0, 0)),
            ],
            out_specs=pl.BlockSpec((1, c_blk, 1, out_H, out_W),
                                   lambda n, c, d: (n, c, d, 0, 0)),
        ),
        compiler_params=pltpu.CompilerParams(
            dimension_semantics=("parallel", "parallel", "parallel")),
        cost_estimate=cost,
    )(sel_h, sel_w, x)


# ---------------------------------------------------------------------------
# AbstractUpsampling.forward
# ---------------------------------------------------------------------------
def abstract_upsampling_forward(encoder_features, x):
    """Nearest-neighbor 3D upsampling of x to encoder_features' spatial size."""
    out_D, out_H, out_W = encoder_features.shape[2:]
    N, C, D_in, H_in, W_in = x.shape
    if (out_D, out_H, out_W) == (D_in, H_in, W_in):
        return x                                   # nearest at same size = identity

    # Static path selection (no try/except: tracing/compile errors would not be
    # catchable and a broad except could silently mask real bugs).
    integer_scale = (out_D % D_in == 0) and (out_H % H_in == 0) and (out_W % W_in == 0)
    if integer_scale:
        return _upsample_nearest_integer(x, out_D, out_H, out_W)
    return _upsample_nearest_general(x, out_D, out_H, out_W)


def _reference_nearest_3d(encoder_features, x):
    """Numpy reference matching F.interpolate(x, size=..., mode='nearest')."""
    out_D, out_H, out_W = encoder_features.shape[2:]
    N, C, D_in, H_in, W_in = x.shape
    d_idx = (np.arange(out_D) * D_in) // out_D
    h_idx = (np.arange(out_H) * H_in) // out_H
    w_idx = (np.arange(out_W) * W_in) // out_W
    xr = np.asarray(x)
    return xr[:, :, d_idx][:, :, :, h_idx][:, :, :, :, w_idx]


if __name__ == "__main__":
    key = jax.random.PRNGKey(0)
    k1, k2, k3 = jax.random.split(key, 3)

    # Case 1: canonical 2x decoder upsample, small narrow volume (folded path).
    x1 = jax.random.normal(k1, (2, 4, 4, 8, 8), dtype=jnp.float32)          # N,C,D,H,W
    enc1 = jax.random.normal(k2, (2, 8, 8, 16, 16), dtype=jnp.float32)
    out1 = jax.block_until_ready(abstract_upsampling_forward(enc1, x1))
    assert out1.shape == (2, 4, 8, 16, 16), out1.shape
    np.testing.assert_allclose(np.asarray(out1),
                               _reference_nearest_3d(enc1, x1), rtol=0, atol=0)

    # Case 2: wide output (out_W >= 128), bf16 -> unfolded path with the depth
    # replication expressed purely in the input index_map.
    x2 = jax.random.normal(k3, (1, 2, 4, 8, 64), dtype=jnp.bfloat16)
    enc2 = jnp.zeros((1, 2, 8, 16, 128), dtype=jnp.bfloat16)
    out2 = jax.block_until_ready(abstract_upsampling_forward(enc2, x2))
    assert out2.shape == (1, 2, 8, 16, 128), out2.shape
    ref2 = _reference_nearest_3d(enc2, np.asarray(x2).astype(np.float32))
    np.testing.assert_allclose(np.asarray(out2).astype(np.float32), ref2,
                               rtol=0, atol=0)

    print("KERNEL_OK")
</pallas_src>

<mosaic_0001>
module attributes {stable_mosaic.version = 11 : i64} {
  func.func @_nearest_repeat_fold_kernel(%arg0: i32, %arg1: i32, %arg2: i32, %arg3: memref<1x1x4x8x8xf32, #tpu.memory_space<vmem>>, %arg4: memref<1x1x8x256xf32, #tpu.memory_space<vmem>>) attributes {dimension_semantics = [#tpu.dimension_semantics<parallel>, #tpu.dimension_semantics<parallel>, #tpu.dimension_semantics<parallel>], iteration_bounds = array<i64: 2, 4, 1>, scalar_prefetch = 0 : i64, scratch_operands = 0 : i64, tpu.core_type = #tpu.core_type<tc>, window_params = [{transform_indices = @transform_0, window_bounds = array<i64: 1, 1, 4, 8, 8>}, {transform_indices = @transform_1, window_bounds = array<i64: 1, 1, 8, 256>}]} {
    %c0 = arith.constant 0 : index
    %c0_0 = arith.constant 0 : index
    %c0_1 = arith.constant 0 : index
    %c0_2 = arith.constant 0 : index
    %c0_3 = arith.constant 0 : index
    %0 = vector.load %arg3[%c0, %c0_0, %c0_1, %c0_2, %c0_3] : memref<1x1x4x8x8xf32, #tpu.memory_space<vmem>>, vector<1x1x4x8x8xf32>
    %1 = vector.shape_cast %0 : vector<1x1x4x8x8xf32> to vector<1x4x8x8xf32>
    %2 = vector.shape_cast %1 : vector<1x4x8x8xf32> to vector<1x4x8x8x1xf32>
    %3 = vector.broadcast %2 : vector<1x4x8x8x1xf32> to vector<1x4x8x8x2xf32>
    %4 = vector.shape_cast %3 : vector<1x4x8x8x2xf32> to vector<1x4x8x16xf32>
    %5 = vector.shape_cast %4 : vector<1x4x8x16xf32> to vector<1x4x8x1x16xf32>
    %6 = vector.broadcast %5 : vector<1x4x8x1x16xf32> to vector<1x4x8x2x16xf32>
    %7 = vector.shape_cast %6 : vector<1x4x8x2x16xf32> to vector<1x4x16x16xf32>
    %8 = vector.shape_cast %7 : vector<1x4x16x16xf32> to vector<1x4x1x16x16xf32>
    %9 = vector.broadcast %8 : vector<1x4x1x16x16xf32> to vector<1x4x2x16x16xf32>
    %10 = vector.shape_cast %9 : vector<1x4x2x16x16xf32> to vector<1x8x16x16xf32>
    %11 = vector.shape_cast %10 : vector<1x8x16x16xf32> to vector<1x8x256xf32>
    %c0_4 = arith.constant 0 : index
    %c0_5 = arith.constant 0 : index
    %c0_6 = arith.constant 0 : index
    %c0_7 = arith.constant 0 : index
    %12 = vector.load %arg4[%c0_4, %c0_5, %c0_6, %c0_7] : memref<1x1x8x256xf32, #tpu.memory_space<vmem>>, vector<1x1x8x256xf32>
    %13 = vector.shape_cast %12 : vector<1x1x8x256xf32> to vector<1x8x256xf32>
    %14 = vector.shape_cast %11 : vector<1x8x256xf32> to vector<1x1x8x256xf32>
    tpu.vector_store %arg4[%c0_4, %c0_5, %c0_6, %c0_7], %14 {strides = array<i32>} : memref<1x1x8x256xf32, #tpu.memory_space<vmem>>, vector<1x1x8x256xf32>,
    return
  }
  func.func @transform_0(%arg0: i32, %arg1: i32, %arg2: i32) -> (i32, i32, i32, i32, i32) {
    %c0_i32 = arith.constant 0 : i32
    %c0_i32_0 = arith.constant 0 : i32
    %c0_i32_1 = arith.constant 0 : i32
    return %arg0, %arg1, %arg2, %c0_i32, %c0_i32_0 : i32, i32, i32, i32, i32
  }
  func.func @transform_1(%arg0: i32, %arg1: i32, %arg2: i32) -> (i32, i32, i32, i32) {
    %c0_i32 = arith.constant 0 : i32
    %c0_i32_0 = arith.constant 0 : i32
    return %arg0, %arg1, %arg2, %c0_i32 : i32, i32, i32, i32
  }
}

</mosaic_0001>

<llo_original>
// kernel: tpu_custom_call.1
$region0: #{tpu_custom_call.1}
  #allocation0 [shape = 'u32[]', space=smem, size = 0x4, offset = 0x4, fixed_abs, tag = 'smem constant byte address 0x4 - core index']
  #allocation1 [shape = 'u32[144,128]{1,0:T(1,128)}', space=vmem, size = 0x12000, scoped, tag = 'internal scratch']
  %s0 = inlined_call_operand.hbm [shape: f32[2,4,4,8,8], index: 0, kind: input, shape index: {}]
  %s1 = inlined_call_operand.hbm [shape: f32[2,4,8,256], index: 1, kind: output, shape index: {}]
  %s2 = sld [smem:[#allocation0]]
  $region41: #{tpu_custom_call.1} parent=0
    _
  %s4 = ssub.s32 1, %s2
  %s5 = scalar_select 0, %s4, %s2
  $region1: #{tpu_custom_call.1} parent=0
    #allocation2 [shape = 'u8[32768]{0}', space=vmem, size = 0x8000, scoped, tag = 'input window, operand 0']
    #allocation3 [shape = 's32[2]{0}', space=sflag, size = 0x8, scoped, tag = 'scoped memory for tpu_custom_call.1']
    #allocation4 [shape = 's32[2]{0}', space=sflag, size = 0x8, scoped, tag = 'scoped memory for tpu_custom_call.1']
    #allocation5 [shape = 'u8[16384]{0}', space=vmem, size = 0x4000, scoped, tag = 'output window, operand 0']
    %6 = vsyncpa [#allocation3], 0
    %s7 = scalar_lea.sflag [#allocation3], 1
    %8 = vsyncpa %s7, 0
    %9 = vsyncpa [#allocation4], 0
    %s10 = scalar_lea.sflag [#allocation4], 1
    %11 = vsyncpa %s10, 0
    loop: start=0, step=1, limit=10
    $region2: #{tpu_custom_call.1} parent=1 // loop_pre_header
      _
    $region3: #{tpu_custom_call.1} parent=1 // loop_header
      %s13 = sphi 0, %s17
      %p14 = scmp.ge.s32.totalorder %s13, 10
      %s20 = sphi 0, %s39
      %s21 = sphi 0, %s35
      %s22 = sphi 0, %s31
      %s23 = sphi 0, %s20
      %s24 = sphi 0, %s21
      %s25 = sphi 0, %s22
      %s26 = sphi 0, %s23
      %s27 = sphi 0, %s24
      %s28 = sphi 0, %s25
      %s46 = sphi 0, %s48
      %s49 = sphi 0, %s46
      %s50 = sphi 0, %s49
      %s66 = sphi 0, %s50
      %s76 = sphi 0, %s78
      %s79 = sphi 0, %s76
      %s80 = sphi 0, %s79
      %s96 = sphi 0, %s80
    $region4: #{tpu_custom_call.1} parent=1 // loop_header_branch
      %16 = sbr.rel (%p14) target = $region8
    $region5: #{tpu_custom_call.1} parent=1 // loop_body
      %s18 = ssub.s32 %s13, 1
      %s19 = ssub.s32 %s13, 2
      %s29 = sadd.s32 1, %s22
      %p30 = scmp.ge.s32.totalorder %s29, 1
      %s31 = scalar_select %p30, 0, %s29
      %s32 = sadd.s32 1, %s21
      %s33 = scalar_select %p30, %s32, %s21
      %p34 = scmp.ge.s32.totalorder %s33, 4
      %s35 = scalar_select %p34, 0, %s33
      %s36 = sadd.s32 1, %s20
      %s37 = scalar_select %p34, %s36, %s20
      %p38 = scmp.ge.s32.totalorder %s37, 2
      %s39 = scalar_select %p38, 0, %s37
      %s40 = ssub.s32 %s20, %s39
      %s41 = ssub.s32 %s21, %s35
      %s42 = sor.u32 %s40, %s41
      %s43 = ssub.s32 %s22, %s31
      %s44 = sor.u32 %s42, %s43
      %p45 = scmp.eq.s32.totalorder %s44, 0
      %s47 = sadd.s32 %s46, 1
      %s48 = scalar_select %p45, %s46, %s47
      %p51 = pneg %p45
      %p52 = scmp.eq.s32.totalorder %s13, 7
      %p53 = por %p51, %p52
      %p54 = scmp.ne.s32.totalorder %s46, %s49
      %p55 = scmp.eq.s32.totalorder %s13, 0
      %p56 = por %p54, %p55
      %p57 = scmp.ne.s32.totalorder %s46, %s49
      %p58 = scmp.eq.s32.totalorder %s18, 7
      %p59 = por %p57, %p58
      %p60 = scmp.ne.s32.totalorder %s49, %s50
      %p61 = scmp.eq.s32.totalorder %s18, 0
      %p62 = por %p60, %p61
      %p63 = scmp.ne.s32.totalorder %s49, %s50
      %p64 = scmp.eq.s32.totalorder %s19, 7
      %p65 = por %p63, %p64
      %p67 = scmp.ne.s32.totalorder %s50, %s66
      %p68 = scmp.eq.s32.totalorder %s19, 0
      %p69 = por %p67, %p68
      %s70 = ssub.s32 %s20, %s39
      %s71 = ssub.s32 %s21, %s35
      %s72 = sor.u32 %s70, %s71
      %s73 = ssub.s32 %s22, %s31
      %s74 = sor.u32 %s72, %s73
      %p75 = scmp.eq.s32.totalorder %s74, 0
      %s77 = sadd.s32 %s76, 1
      %s78 = scalar_select %p75, %s76, %s77
      %p81 = pneg %p75
      %p82 = scmp.eq.s32.totalorder %s13, 7
      %p83 = por %p81, %p82
      %p84 = scmp.ne.s32.totalorder %s76, %s79
      %p85 = scmp.eq.s32.totalorder %s13, 0
      %p86 = por %p84, %p85
      %p87 = scmp.ne.s32.totalorder %s76, %s79
      %p88 = scmp.eq.s32.totalorder %s18, 7
      %p89 = por %p87, %p88
      %p90 = scmp.ne.s32.totalorder %s79, %s80
      %p91 = scmp.eq.s32.totalorder %s18, 0
      %p92 = por %p90, %p91
      %p93 = scmp.ne.s32.totalorder %s79, %s80
      %p94 = scmp.eq.s32.totalorder %s19, 7
      %p95 = por %p93, %p94
      %p97 = scmp.ne.s32.totalorder %s80, %s96
      %p98 = scmp.eq.s32.totalorder %s19, 0
      %p99 = por %p97, %p98
      %p100 = scmp.le.s32.totalorder 1, %s13
      %p101 = scmp.lt.s32.totalorder %s13, 9
      %p102 = pnand %p100, %p101
      %p103 = pneg %p102
      // Predicated region
      $region9: #{tpu_custom_call.1} parent=5 // pred_check
        _
      $region10: #{tpu_custom_call.1} parent=5 // pred_check_branch
        %105 = sbr.rel (%p102) target = $region12
      $region11: #{tpu_custom_call.1} parent=5 // pred_region
        %s106 = ssub.s32 %s13, 1
      $region12: #{tpu_custom_call.1} parent=5 // pred_fallthru
        _
      %p107 = scmp.lt.s32.totalorder %s13, 8
      // Predicated region
      $region13: #{tpu_custom_call.1} parent=5 // pred_check
        %p108 = pneg %p107
      $region14: #{tpu_custom_call.1} parent=5 // pred_check_branch
        %110 = sbr.rel (%p108) target = $region16
      $region15: #{tpu_custom_call.1} parent=5 // pred_region
        // Predicated region
        $region17: #{tpu_custom_call.1} parent=15 // pred_check
          %p111 = pneg %p56
        $region18: #{tpu_custom_call.1} parent=15 // pred_check_branch
          %113 = sbr.rel (%p111) target = $region20
        $region19: #{tpu_custom_call.1} parent=15 // pred_region
          %s114 = sand.u32 %s46, 1
          %s115 = scalar_lea.sflag [#allocation3], %s114
          %s116 = sand.u32 %s46, 1
          %s117 = smul.addr %s116, 32
          %s118 = scalar_lea.vmem [#allocation2], %s117
          %s119 = smul.u32 4, %s22
          %s121 = ssub.s32 512, 512
          %122 = vsyncadd %s115, %s121
          %s123 = smul.addr %s21, 4
          %s124 = sadd.s32 %s119, %s123
          %s125 = smul.addr %s20, 16
          %s126 = sadd.s32 %s124, %s125
          %s127 = smul.addr %s126, 128
          %s128 = scalar_lea.hbm %s0, %s127
          %s129 = sshll.u32 %s118, 4
          %s130 = int_to_ptr.vmem [resolvable:$true] %s129
          %135 = dma.hbm_to_vmem [thread:$0]  %s128, 512, %s130, %s115, 128, 128, 8
        $region20: #{tpu_custom_call.1} parent=15 // pred_fallthru
          _
      $region16: #{tpu_custom_call.1} parent=5 // pred_fallthru
        _
      %p136 = scmp.le.s32.totalorder 1, %s13
      %p137 = scmp.lt.s32.totalorder %s13, 9
      %p138 = pnand %p136, %p137
      %p139 = pneg %p138
      // Predicated region
      $region21: #{tpu_custom_call.1} parent=5 // pred_check
        _
      $region22: #{tpu_custom_call.1} parent=5 // pred_check_branch
        %141 = sbr.rel (%p138) target = $region24
      $region23: #{tpu_custom_call.1} parent=5 // pred_region
        %s142 = ssub.s32 %s13, 1
        %s143 = sand.u32 %s49, 1
        %s144 = scalar_lea.sflag [#allocation3], %s143
        %s145 = sand.u32 %s49, 1
        %s146 = smul.addr %s145, 32
        %s147 = scalar_lea.vmem [#allocation2], %s146
        // Predicated region
        $region25: #{tpu_custom_call.1} parent=23 // pred_check
          %p148 = pneg %p62
        $region26: #{tpu_custom_call.1} parent=23 // pred_check_branch
          %150 = sbr.rel (%p148) target = $region28
        $region27: #{tpu_custom_call.1} parent=23 // pred_region
          %151 = dma.done %s144, 512
        $region28: #{tpu_custom_call.1} parent=23 // pred_fallthru
          _
        %s152 = sand.u32 %s49, 1
        %s153 = scalar_lea.sflag [#allocation3], %s152
        %s154 = sand.u32 %s49, 1
        %s155 = smul.addr %s154, 32
        %s156 = scalar_lea.vmem [#allocation2], %s155
        %p157 = pneg %p62
        %p158 = pneg %p59
        %p159 = pneg %p92
        %p160 = pneg %p89
        %s161 = sand.u32 %s79, 1
        %s162 = scalar_lea.sflag [#allocation4], %s161
        %s163 = sand.u32 %s79, 1
        %s164 = smul.addr %s163, 16
        %s165 = scalar_lea.vmem [#allocation5], %s164
        %s166 = smul.u32 4, %s25
        %v167 = vld [vmem:[%s147] sm:$0xff]
        %v168 = vld [vmem:[%s147 + $0x8] sm:$0xff]
        %v169 = vld [vmem:[%s147 + $0x10] sm:$0xff]
        %v170 = vld [vmem:[%s147 + $0x18] sm:$0xff]
        %v171 = vlaneseq
        %v172 = vshrl.u32 %v171, 7
        %v173 = vsub.s32 0, %v172
        %v174 = vrot.slane %v167, %v173
        %176 = vbcast.lane.b32.xlu0 %v174, 256
        %v177 = vpop.permute.xlu0 %176
        %v178 = vlaneseq
        %v179 = vshrl.u32 %v178, 7
        %v180 = vsub.s32 1, %v179
        %v181 = vrot.slane %v167, %v180
        %183 = vbcast.lane.b32.xlu0 %v181, 256
        %v184 = vpop.permute.xlu0 %183
        %v185 = vlaneseq
        %v186 = vshrl.u32 %v185, 7
        %v187 = vsub.s32 2, %v186
        %v188 = vrot.slane %v167, %v187
        %190 = vbcast.lane.b32.xlu0 %v188, 256
        %v191 = vpop.permute.xlu0 %190
        %v192 = vlaneseq
        %v193 = vshrl.u32 %v192, 7
        %v194 = vsub.s32 3, %v193
        %v195 = vrot.slane %v167, %v194
        %197 = vbcast.lane.b32.xlu0 %v195, 256
        %v198 = vpop.permute.xlu0 %197
        %v199 = vlaneseq
        %v200 = vshrl.u32 %v199, 7
        %v201 = vsub.s32 4, %v200
        %v202 = vrot.slane %v167, %v201
        %204 = vbcast.lane.b32.xlu0 %v202, 256
        %v205 = vpop.permute.xlu0 %204
        %v206 = vlaneseq
        %v207 = vshrl.u32 %v206, 7
        %v208 = vsub.s32 5, %v207
        %v209 = vrot.slane %v167, %v208
        %211 = vbcast.lane.b32.xlu0 %v209, 256
        %v212 = vpop.permute.xlu0 %211
        %v213 = vlaneseq
        %v214 = vshrl.u32 %v213, 7
        %v215 = vsub.s32 6, %v214
        %v216 = vrot.slane %v167, %v215
        %218 = vbcast.lane.b32.xlu0 %v216, 256
        %v219 = vpop.permute.xlu0 %218
        %v220 = vlaneseq
        %v221 = vshrl.u32 %v220, 7
        %v222 = vsub.s32 7, %v221
        %v223 = vrot.slane %v167, %v222
        %225 = vbcast.lane.b32.xlu0 %v223, 256
        %v226 = vpop.permute.xlu0 %225
        %v227 = vlaneseq
        %v228 = vshrl.u32 %v227, 7
        %v229 = vsub.s32 0, %v228
        %v230 = vrot.slane %v168, %v229
        %232 = vbcast.lane.b32.xlu0 %v230, 256
        %v233 = vpop.permute.xlu0 %232
        %v234 = vlaneseq
        %v235 = vshrl.u32 %v234, 7
        %v236 = vsub.s32 1, %v235
        %v237 = vrot.slane %v168, %v236
        %239 = vbcast.lane.b32.xlu0 %v237, 256
        %v240 = vpop.permute.xlu0 %239
        %v241 = vlaneseq
        %v242 = vshrl.u32 %v241, 7
        %v243 = vsub.s32 2, %v242
        %v244 = vrot.slane %v168, %v243
        %246 = vbcast.lane.b32.xlu0 %v244, 256
        %v247 = vpop.permute.xlu0 %246
        %v248 = vlaneseq
        %v249 = vshrl.u32 %v248, 7
        %v250 = vsub.s32 3, %v249
        %v251 = vrot.slane %v168, %v250
        %253 = vbcast.lane.b32.xlu0 %v251, 256
        %v254 = vpop.permute.xlu0 %253
        %v255 = vlaneseq
        %v256 = vshrl.u32 %v255, 7
        %v257 = vsub.s32 4, %v256
        %v258 = vrot.slane %v168, %v257
        %260 = vbcast.lane.b32.xlu0 %v258, 256
        %v261 = vpop.permute.xlu0 %260
        %v262 = vlaneseq
        %v263 = vshrl.u32 %v262, 7
        %v264 = vsub.s32 5, %v263
        %v265 = vrot.slane %v168, %v264
        %267 = vbcast.lane.b32.xlu0 %v265, 256
        %v268 = vpop.permute.xlu0 %267
        %v269 = vlaneseq
        %v270 = vshrl.u32 %v269, 7
        %v271 = vsub.s32 6, %v270
        %v272 = vrot.slane %v168, %v271
        %274 = vbcast.lane.b32.xlu0 %v272, 256
        %v275 = vpop.permute.xlu0 %274
        %v276 = vlaneseq
        %v277 = vshrl.u32 %v276, 7
        %v278 = vsub.s32 7, %v277
        %v279 = vrot.slane %v168, %v278
        %281 = vbcast.lane.b32.xlu0 %v279, 256
        %v282 = vpop.permute.xlu0 %281
        %v283 = vlaneseq
        %v284 = vshrl.u32 %v283, 7
        %v285 = vsub.s32 0, %v284
        %v286 = vrot.slane %v169, %v285
        %288 = vbcast.lane.b32.xlu0 %v286, 256
        %v289 = vpop.permute.xlu0 %288
        %v290 = vlaneseq
        %v291 = vshrl.u32 %v290, 7
        %v292 = vsub.s32 1, %v291
        %v293 = vrot.slane %v169, %v292
        %295 = vbcast.lane.b32.xlu0 %v293, 256
        %v296 = vpop.permute.xlu0 %295
        %v297 = vlaneseq
        %v298 = vshrl.u32 %v297, 7
        %v299 = vsub.s32 2, %v298
        %v300 = vrot.slane %v169, %v299
        %302 = vbcast.lane.b32.xlu0 %v300, 256
        %v303 = vpop.permute.xlu0 %302
        %v304 = vlaneseq
        %v305 = vshrl.u32 %v304, 7
        %v306 = vsub.s32 3, %v305
        %v307 = vrot.slane %v169, %v306
        %309 = vbcast.lane.b32.xlu0 %v307, 256
        %v310 = vpop.permute.xlu0 %309
        %v311 = vlaneseq
        %v312 = vshrl.u32 %v311, 7
        %v313 = vsub.s32 4, %v312
        %v314 = vrot.slane %v169, %v313
        %316 = vbcast.lane.b32.xlu0 %v314, 256
        %v317 = vpop.permute.xlu0 %316
        %v318 = vlaneseq
        %v319 = vshrl.u32 %v318, 7
        %v320 = vsub.s32 5, %v319
        %v321 = vrot.slane %v169, %v320
        %323 = vbcast.lane.b32.xlu0 %v321, 256
        %v324 = vpop.permute.xlu0 %323
        %v325 = vlaneseq
        %v326 = vshrl.u32 %v325, 7
        %v327 = vsub.s32 6, %v326
        %v328 = vrot.slane %v169, %v327
        %330 = vbcast.lane.b32.xlu0 %v328, 256
        %v331 = vpop.permute.xlu0 %330
        %v332 = vlaneseq
        %v333 = vshrl.u32 %v332, 7
        %v334 = vsub.s32 7, %v333
        %v335 = vrot.slane %v169, %v334
        %337 = vbcast.lane.b32.xlu0 %v335, 256
        %v338 = vpop.permute.xlu0 %337
        %v339 = vlaneseq
        %v340 = vshrl.u32 %v339, 7
        %v341 = vsub.s32 0, %v340
        %v342 = vrot.slane %v170, %v341
        %344 = vbcast.lane.b32.xlu0 %v342, 256
        %v345 = vpop.permute.xlu0 %344
        %v346 = vlaneseq
        %v347 = vshrl.u32 %v346, 7
        %v348 = vsub.s32 1, %v347
        %v349 = vrot.slane %v170, %v348
        %351 = vbcast.lane.b32.xlu0 %v349, 256
        %v352 = vpop.permute.xlu0 %351
        %v353 = vlaneseq
        %v354 = vshrl.u32 %v353, 7
        %v355 = vsub.s32 2, %v354
        %v356 = vrot.slane %v170, %v355
        %358 = vbcast.lane.b32.xlu0 %v356, 256
        %v359 = vpop.permute.xlu0 %358
        %v360 = vlaneseq
        %v361 = vshrl.u32 %v360, 7
        %v362 = vsub.s32 3, %v361
        %v363 = vrot.slane %v170, %v362
        %365 = vbcast.lane.b32.xlu0 %v363, 256
        %v366 = vpop.permute.xlu0 %365
        %v367 = vlaneseq
        %v368 = vshrl.u32 %v367, 7
        %v369 = vsub.s32 4, %v368
        %v370 = vrot.slane %v170, %v369
        %372 = vbcast.lane.b32.xlu0 %v370, 256
        %v373 = vpop.permute.xlu0 %372
        %v374 = vlaneseq
        %v375 = vshrl.u32 %v374, 7
        %v376 = vsub.s32 5, %v375
        %v377 = vrot.slane %v170, %v376
        %379 = vbcast.lane.b32.xlu0 %v377, 256
        %v380 = vpop.permute.xlu0 %379
        %v381 = vlaneseq
        %v382 = vshrl.u32 %v381, 7
        %v383 = vsub.s32 6, %v382
        %v384 = vrot.slane %v170, %v383
        %386 = vbcast.lane.b32.xlu0 %v384, 256
        %v387 = vpop.permute.xlu0 %386
        %v388 = vlaneseq
        %v389 = vshrl.u32 %v388, 7
        %v390 = vsub.s32 7, %v389
        %v391 = vrot.slane %v170, %v390
        %393 = vbcast.lane.b32.xlu0 %v391, 256
        %v394 = vpop.permute.xlu0 %393
        %v395 = vcombine.high %v177, 0.0
        %v397 = vunpack.c.l.s4 1983009808
        %v398 = vunpack.c.0.s8 %v397
        %v399 = vlaneseq
        %v400 = vshrl.u32 %v399, 7
        %v401 = vsub.s32 %v398, %v400
        %v402 = vrot.slane %v177, %v401
        %v404 = vunpack.c.l.s4 1983009808
        %v405 = vunpack.c.0.s8 %v404
        %v406 = vlaneseq
        %v407 = vshrl.u32 %v406, 7
        %v408 = vsub.s32 %v405, %v407
        %v409 = vrot.slane %v395, %v408
        %v410 = vcombine.high %v402, 0.0
        %v412 = vunpack.c.l.s4 1934713408
        %v413 = vunpack.c.0.s8 %v412
        %v414 = vlaneseq
        %v415 = vshrl.u32 %v414, 7
        %v416 = vsub.s32 %v413, %v415
        %v417 = vrot.slane %v402, %v416
        %v419 = vunpack.c.l.s4 1934713408
        %v420 = vunpack.c.0.s8 %v419
        %v421 = vlaneseq
        %v422 = vshrl.u32 %v421, 7
        %v423 = vsub.s32 %v420, %v422
        %v424 = vrot.slane %v410, %v423
        %v425 = vcombine.high %v409, 0.0
        %v427 = vunpack.c.l.s4 1934713408
        %v428 = vunpack.c.0.s8 %v427
        %v429 = vlaneseq
        %v430 = vshrl.u32 %v429, 7
        %v431 = vsub.s32 %v428, %v430
        %v432 = vrot.slane %v409, %v431
        %v434 = vunpack.c.l.s4 1934713408
        %v435 = vunpack.c.0.s8 %v434
        %v436 = vlaneseq
        %v437 = vshrl.u32 %v436, 7
        %v438 = vsub.s32 %v435, %v437
        %v439 = vrot.slane %v425, %v438
        %v440 = vcombine.high %v417, 0.0
        %v441 = vcombine.high %v424, 0.0
        %v442 = vcombine.high %v432, 0.0
        %v443 = vcombine.high %v439, 0.0
        %v444 = vcombine.high %v184, 0.0
        %v446 = vunpack.c.l.s4 1983009808
        %v447 = vunpack.c.0.s8 %v446
        %v448 = vlaneseq
        %v449 = vshrl.u32 %v448, 7
        %v450 = vsub.s32 %v447, %v449
        %v451 = vrot.slane %v184, %v450
        %v453 = vunpack.c.l.s4 1983009808
        %v454 = vunpack.c.0.s8 %v453
        %v455 = vlaneseq
        %v456 = vshrl.u32 %v455, 7
        %v457 = vsub.s32 %v454, %v456
        %v458 = vrot.slane %v444, %v457
        %v459 = vcombine.high %v451, 0.0
        %v461 = vunpack.c.l.s4 1934713408
        %v462 = vunpack.c.0.s8 %v461
        %v463 = vlaneseq
        %v464 = vshrl.u32 %v463, 7
        %v465 = vsub.s32 %v462, %v464
        %v466 = vrot.slane %v451, %v465
        %v468 = vunpack.c.l.s4 1934713408
        %v469 = vunpack.c.0.s8 %v468
        %v470 = vlaneseq
        %v471 = vshrl.u32 %v470, 7
        %v472 = vsub.s32 %v469, %v471
        %v473 = vrot.slane %v459, %v472
        %v474 = vcombine.high %v458, 0.0
        %v476 = vunpack.c.l.s4 1934713408
        %v477 = vunpack.c.0.s8 %v476
        %v478 = vlaneseq
        %v479 = vshrl.u32 %v478, 7
        %v480 = vsub.s32 %v477, %v479
        %v481 = vrot.slane %v458, %v480
        %v483 = vunpack.c.l.s4 1934713408
        %v484 = vunpack.c.0.s8 %v483
        %v485 = vlaneseq
        %v486 = vshrl.u32 %v485, 7
        %v487 = vsub.s32 %v484, %v486
        %v488 = vrot.slane %v474, %v487
        %v489 = vcombine.high %v466, 0.0
        %v490 = vcombine.high %v473, 0.0
        %v491 = vcombine.high %v481, 0.0
        %v492 = vcombine.high %v488, 0.0
        %v493 = vcombine.high %v191, 0.0
        %v495 = vunpack.c.l.s4 1983009808
        %v496 = vunpack.c.0.s8 %v495
        %v497 = vlaneseq
        %v498 = vshrl.u32 %v497, 7
        %v499 = vsub.s32 %v496, %v498
        %v500 = vrot.slane %v191, %v499
        %v502 = vunpack.c.l.s4 1983009808
        %v503 = vunpack.c.0.s8 %v502
        %v504 = vlaneseq
        %v505 = vshrl.u32 %v504, 7
        %v506 = vsub.s32 %v503, %v505
        %v507 = vrot.slane %v493, %v506
        %v508 = vcombine.high %v500, 0.0
        %v510 = vunpack.c.l.s4 1934713408
        %v511 = vunpack.c.0.s8 %v510
        %v512 = vlaneseq
        %v513 = vshrl.u32 %v512, 7
        %v514 = vsub.s32 %v511, %v513
        %v515 = vrot.slane %v500, %v514
        %v517 = vunpack.c.l.s4 1934713408
        %v518 = vunpack.c.0.s8 %v517
        %v519 = vlaneseq
        %v520 = vshrl.u32 %v519, 7
        %v521 = vsub.s32 %v518, %v520
        %v522 = vrot.slane %v508, %v521
        %v523 = vcombine.high %v507, 0.0
        %v525 = vunpack.c.l.s4 1934713408
        %v526 = vunpack.c.0.s8 %v525
        %v527 = vlaneseq
        %v528 = vshrl.u32 %v527, 7
        %v529 = vsub.s32 %v526, %v528
        %v530 = vrot.slane %v507, %v529
        %v532 = vunpack.c.l.s4 1934713408
        %v533 = vunpack.c.0.s8 %v532
        %v534 = vlaneseq
        %v535 = vshrl.u32 %v534, 7
        %v536 = vsub.s32 %v533, %v535
        %v537 = vrot.slane %v523, %v536
        %v538 = vcombine.high %v515, 0.0
        %v539 = vcombine.high %v522, 0.0
        %v540 = vcombine.high %v530, 0.0
        %v541 = vcombine.high %v537, 0.0
        %v542 = vcombine.high %v198, 0.0
        %v544 = vunpack.c.l.s4 1983009808
        %v545 = vunpack.c.0.s8 %v544
        %v546 = vlaneseq
        %v547 = vshrl.u32 %v546, 7
        %v548 = vsub.s32 %v545, %v547
        %v549 = vrot.slane %v198, %v548
        %v551 = vunpack.c.l.s4 1983009808
        %v552 = vunpack.c.0.s8 %v551
        %v553 = vlaneseq
        %v554 = vshrl.u32 %v553, 7
        %v555 = vsub.s32 %v552, %v554
        %v556 = vrot.slane %v542, %v555
        %v557 = vcombine.high %v549, 0.0
        %v559 = vunpack.c.l.s4 1934713408
        %v560 = vunpack.c.0.s8 %v559
        %v561 = vlaneseq
        %v562 = vshrl.u32 %v561, 7
        %v563 = vsub.s32 %v560, %v562
        %v564 = vrot.slane %v549, %v563
        %v566 = vunpack.c.l.s4 1934713408
        %v567 = vunpack.c.0.s8 %v566
        %v568 = vlaneseq
        %v569 = vshrl.u32 %v568, 7
        %v570 = vsub.s32 %v567, %v569
        %v571 = vrot.slane %v557, %v570
        %v572 = vcombine.high %v556, 0.0
        %v574 = vunpack.c.l.s4 1934713408
        %v575 = vunpack.c.0.s8 %v574
        %v576 = vlaneseq
        %v577 = vshrl.u32 %v576, 7
        %v578 = vsub.s32 %v575, %v577
        %v579 = vrot.slane %v556, %v578
        %v581 = vunpack.c.l.s4 1934713408
        %v582 = vunpack.c.0.s8 %v581
        %v583 = vlaneseq
        %v584 = vshrl.u32 %v583, 7
        %v585 = vsub.s32 %v582, %v584
        %v586 = vrot.slane %v572, %v585
        %v587 = vcombine.high %v564, 0.0
        %v588 = vcombine.high %v571, 0.0
        %v589 = vcombine.high %v579, 0.0
        %v590 = vcombine.high %v586, 0.0
        %v591 = vcombine.high %v205, 0.0
        %v593 = vunpack.c.l.s4 1983009808
        %v594 = vunpack.c.0.s8 %v593
        %v595 = vlaneseq
        %v596 = vshrl.u32 %v595, 7
        %v597 = vsub.s32 %v594, %v596
        %v598 = vrot.slane %v205, %v597
        %v600 = vunpack.c.l.s4 1983009808
        %v601 = vunpack.c.0.s8 %v600
        %v602 = vlaneseq
        %v603 = vshrl.u32 %v602, 7
        %v604 = vsub.s32 %v601, %v603
        %v605 = vrot.slane %v591, %v604
        %v606 = vcombine.high %v598, 0.0
        %v608 = vunpack.c.l.s4 1934713408
        %v609 = vunpack.c.0.s8 %v608
        %v610 = vlaneseq
        %v611 = vshrl.u32 %v610, 7
        %v612 = vsub.s32 %v609, %v611
        %v613 = vrot.slane %v598, %v612
        %v615 = vunpack.c.l.s4 1934713408
        %v616 = vunpack.c.0.s8 %v615
        %v617 = vlaneseq
        %v618 = vshrl.u32 %v617, 7
        %v619 = vsub.s32 %v616, %v618
        %v620 = vrot.slane %v606, %v619
        %v621 = vcombine.high %v605, 0.0
        %v623 = vunpack.c.l.s4 1934713408
        %v624 = vunpack.c.0.s8 %v623
        %v625 = vlaneseq
        %v626 = vshrl.u32 %v625, 7
        %v627 = vsub.s32 %v624, %v626
        %v628 = vrot.slane %v605, %v627
        %v630 = vunpack.c.l.s4 1934713408
        %v631 = vunpack.c.0.s8 %v630
        %v632 = vlaneseq
        %v633 = vshrl.u32 %v632, 7
        %v634 = vsub.s32 %v631, %v633
        %v635 = vrot.slane %v621, %v634
        %v636 = vcombine.high %v613, 0.0
        %v637 = vcombine.high %v620, 0.0
        %v638 = vcombine.high %v628, 0.0
        %v639 = vcombine.high %v635, 0.0
        %v640 = vcombine.high %v212, 0.0
        %v642 = vunpack.c.l.s4 1983009808
        %v643 = vunpack.c.0.s8 %v642
        %v644 = vlaneseq
        %v645 = vshrl.u32 %v644, 7
        %v646 = vsub.s32 %v643, %v645
        %v647 = vrot.slane %v212, %v646
        %v649 = vunpack.c.l.s4 1983009808
        %v650 = vunpack.c.0.s8 %v649
        %v651 = vlaneseq
        %v652 = vshrl.u32 %v651, 7
        %v653 = vsub.s32 %v650, %v652
        %v654 = vrot.slane %v640, %v653
        %v655 = vcombine.high %v647, 0.0
        %v657 = vunpack.c.l.s4 1934713408
        %v658 = vunpack.c.0.s8 %v657
        %v659 = vlaneseq
        %v660 = vshrl.u32 %v659, 7
        %v661 = vsub.s32 %v658, %v660
        %v662 = vrot.slane %v647, %v661
        %v664 = vunpack.c.l.s4 1934713408
        %v665 = vunpack.c.0.s8 %v664
        %v666 = vlaneseq
        %v667 = vshrl.u32 %v666, 7
        %v668 = vsub.s32 %v665, %v667
        %v669 = vrot.slane %v655, %v668
        %v670 = vcombine.high %v654, 0.0
        %v672 = vunpack.c.l.s4 1934713408
        %v673 = vunpack.c.0.s8 %v672
        %v674 = vlaneseq
        %v675 = vshrl.u32 %v674, 7
        %v676 = vsub.s32 %v673, %v675
        %v677 = vrot.slane %v654, %v676
        %v679 = vunpack.c.l.s4 1934713408
        %v680 = vunpack.c.0.s8 %v679
        %v681 = vlaneseq
        %v682 = vshrl.u32 %v681, 7
        %v683 = vsub.s32 %v680, %v682
        %v684 = vrot.slane %v670, %v683
        %v685 = vcombine.high %v662, 0.0
        %v686 = vcombine.high %v669, 0.0
        %v687 = vcombine.high %v677, 0.0
        %v688 = vcombine.high %v684, 0.0
        %v689 = vcombine.high %v219, 0.0
        %v691 = vunpack.c.l.s4 1983009808
        %v692 = vunpack.c.0.s8 %v691
        %v693 = vlaneseq
        %v694 = vshrl.u32 %v693, 7
        %v695 = vsub.s32 %v692, %v694
        %v696 = vrot.slane %v219, %v695
        %v698 = vunpack.c.l.s4 1983009808
        %v699 = vunpack.c.0.s8 %v698
        %v700 = vlaneseq
        %v701 = vshrl.u32 %v700, 7
        %v702 = vsub.s32 %v699, %v701
        %v703 = vrot.slane %v689, %v702
        %v704 = vcombine.high %v696, 0.0
        %v706 = vunpack.c.l.s4 1934713408
        %v707 = vunpack.c.0.s8 %v706
        %v708 = vlaneseq
        %v709 = vshrl.u32 %v708, 7
        %v710 = vsub.s32 %v707, %v709
        %v711 = vrot.slane %v696, %v710
        %v713 = vunpack.c.l.s4 1934713408
        %v714 = vunpack.c.0.s8 %v713
        %v715 = vlaneseq
        %v716 = vshrl.u32 %v715, 7
        %v717 = vsub.s32 %v714, %v716
        %v718 = vrot.slane %v704, %v717
        %v719 = vcombine.high %v703, 0.0
        %v721 = vunpack.c.l.s4 1934713408
        %v722 = vunpack.c.0.s8 %v721
        %v723 = vlaneseq
        %v724 = vshrl.u32 %v723, 7
        %v725 = vsub.s32 %v722, %v724
        %v726 = vrot.slane %v703, %v725
        %v728 = vunpack.c.l.s4 1934713408
        %v729 = vunpack.c.0.s8 %v728
        %v730 = vlaneseq
        %v731 = vshrl.u32 %v730, 7
        %v732 = vsub.s32 %v729, %v731
        %v733 = vrot.slane %v719, %v732
        %v734 = vcombine.high %v711, 0.0
        %v735 = vcombine.high %v718, 0.0
        %v736 = vcombine.high %v726, 0.0
        %v737 = vcombine.high %v733, 0.0
        %v738 = vcombine.high %v226, 0.0
        %v740 = vunpack.c.l.s4 1983009808
        %v741 = vunpack.c.0.s8 %v740
        %v742 = vlaneseq
        %v743 = vshrl.u32 %v742, 7
        %v744 = vsub.s32 %v741, %v743
        %v745 = vrot.slane %v226, %v744
        %v747 = vunpack.c.l.s4 1983009808
        %v748 = vunpack.c.0.s8 %v747
        %v749 = vlaneseq
        %v750 = vshrl.u32 %v749, 7
        %v751 = vsub.s32 %v748, %v750
        %v752 = vrot.slane %v738, %v751
        %v753 = vcombine.high %v745, 0.0
        %v755 = vunpack.c.l.s4 1934713408
        %v756 = vunpack.c.0.s8 %v755
        %v757 = vlaneseq
        %v758 = vshrl.u32 %v757, 7
        %v759 = vsub.s32 %v756, %v758
        %v760 = vrot.slane %v745, %v759
        %v762 = vunpack.c.l.s4 1934713408
        %v763 = vunpack.c.0.s8 %v762
        %v764 = vlaneseq
        %v765 = vshrl.u32 %v764, 7
        %v766 = vsub.s32 %v763, %v765
        %v767 = vrot.slane %v753, %v766
        %v768 = vcombine.high %v752, 0.0
        %v770 = vunpack.c.l.s4 1934713408
        %v771 = vunpack.c.0.s8 %v770
        %v772 = vlaneseq
        %v773 = vshrl.u32 %v772, 7
        %v774 = vsub.s32 %v771, %v773
        %v775 = vrot.slane %v752, %v774
        %v777 = vunpack.c.l.s4 1934713408
        %v778 = vunpack.c.0.s8 %v777
        %v779 = vlaneseq
        %v780 = vshrl.u32 %v779, 7
        %v781 = vsub.s32 %v778, %v780
        %v782 = vrot.slane %v768, %v781
        %v783 = vcombine.high %v760, 0.0
        %v784 = vcombine.high %v767, 0.0
        %v785 = vcombine.high %v775, 0.0
        %v786 = vcombine.high %v782, 0.0
        %v787 = vcombine.high %v233, 0.0
        %v789 = vunpack.c.l.s4 1983009808
        %v790 = vunpack.c.0.s8 %v789
        %v791 = vlaneseq
        %v792 = vshrl.u32 %v791, 7
        %v793 = vsub.s32 %v790, %v792
        %v794 = vrot.slane %v233, %v793
        %v796 = vunpack.c.l.s4 1983009808
        %v797 = vunpack.c.0.s8 %v796
        %v798 = vlaneseq
        %v799 = vshrl.u32 %v798, 7
        %v800 = vsub.s32 %v797, %v799
        %v801 = vrot.slane %v787, %v800
        %v802 = vcombine.high %v794, 0.0
        %v804 = vunpack.c.l.s4 1934713408
        %v805 = vunpack.c.0.s8 %v804
        %v806 = vlaneseq
        %v807 = vshrl.u32 %v806, 7
        %v808 = vsub.s32 %v805, %v807
        %v809 = vrot.slane %v794, %v808
        %v811 = vunpack.c.l.s4 1934713408
        %v812 = vunpack.c.0.s8 %v811
        %v813 = vlaneseq
        %v814 = vshrl.u32 %v813, 7
        %v815 = vsub.s32 %v812, %v814
        %v816 = vrot.slane %v802, %v815
        %v817 = vcombine.high %v801, 0.0
        %v819 = vunpack.c.l.s4 1934713408
        %v820 = vunpack.c.0.s8 %v819
        %v821 = vlaneseq
        %v822 = vshrl.u32 %v821, 7
        %v823 = vsub.s32 %v820, %v822
        %v824 = vrot.slane %v801, %v823
        %v826 = vunpack.c.l.s4 1934713408
        %v827 = vunpack.c.0.s8 %v826
        %v828 = vlaneseq
        %v829 = vshrl.u32 %v828, 7
        %v830 = vsub.s32 %v827, %v829
        %v831 = vrot.slane %v817, %v830
        %v832 = vcombine.high %v809, 0.0
        %v833 = vcombine.high %v816, 0.0
        %v834 = vcombine.high %v824, 0.0
        %v835 = vcombine.high %v831, 0.0
        %v836 = vcombine.high %v240, 0.0
        %v838 = vunpack.c.l.s4 1983009808
        %v839 = vunpack.c.0.s8 %v838
        %v840 = vlaneseq
        %v841 = vshrl.u32 %v840, 7
        %v842 = vsub.s32 %v839, %v841
        %v843 = vrot.slane %v240, %v842
        %v845 = vunpack.c.l.s4 1983009808
        %v846 = vunpack.c.0.s8 %v845
        %v847 = vlaneseq
        %v848 = vshrl.u32 %v847, 7
        %v849 = vsub.s32 %v846, %v848
        %v850 = vrot.slane %v836, %v849
        %v851 = vcombine.high %v843, 0.0
        %v853 = vunpack.c.l.s4 1934713408
        %v854 = vunpack.c.0.s8 %v853
        %v855 = vlaneseq
        %v856 = vshrl.u32 %v855, 7
        %v857 = vsub.s32 %v854, %v856
        %v858 = vrot.slane %v843, %v857
        %v860 = vunpack.c.l.s4 1934713408
        %v861 = vunpack.c.0.s8 %v860
        %v862 = vlaneseq
        %v863 = vshrl.u32 %v862, 7
        %v864 = vsub.s32 %v861, %v863
        %v865 = vrot.slane %v851, %v864
        %v866 = vcombine.high %v850, 0.0
        %v868 = vunpack.c.l.s4 1934713408
        %v869 = vunpack.c.0.s8 %v868
        %v870 = vlaneseq
        %v871 = vshrl.u32 %v870, 7
        %v872 = vsub.s32 %v869, %v871
        %v873 = vrot.slane %v850, %v872
        %v875 = vunpack.c.l.s4 1934713408
        %v876 = vunpack.c.0.s8 %v875
        %v877 = vlaneseq
        %v878 = vshrl.u32 %v877, 7
        %v879 = vsub.s32 %v876, %v878
        %v880 = vrot.slane %v866, %v879
        %v881 = vcombine.high %v858, 0.0
        %v882 = vcombine.high %v865, 0.0
        %v883 = vcombine.high %v873, 0.0
        %v884 = vcombine.high %v880, 0.0
        %v885 = vcombine.high %v247, 0.0
        %v887 = vunpack.c.l.s4 1983009808
        %v888 = vunpack.c.0.s8 %v887
        %v889 = vlaneseq
        %v890 = vshrl.u32 %v889, 7
        %v891 = vsub.s32 %v888, %v890
        %v892 = vrot.slane %v247, %v891
        %v894 = vunpack.c.l.s4 1983009808
        %v895 = vunpack.c.0.s8 %v894
        %v896 = vlaneseq
        %v897 = vshrl.u32 %v896, 7
        %v898 = vsub.s32 %v895, %v897
        %v899 = vrot.slane %v885, %v898
        %v900 = vcombine.high %v892, 0.0
        %v902 = vunpack.c.l.s4 1934713408
        %v903 = vunpack.c.0.s8 %v902
        %v904 = vlaneseq
        %v905 = vshrl.u32 %v904, 7
        %v906 = vsub.s32 %v903, %v905
        %v907 = vrot.slane %v892, %v906
        %v909 = vunpack.c.l.s4 1934713408
        %v910 = vunpack.c.0.s8 %v909
        %v911 = vlaneseq
        %v912 = vshrl.u32 %v911, 7
        %v913 = vsub.s32 %v910, %v912
        %v914 = vrot.slane %v900, %v913
        %v915 = vcombine.high %v899, 0.0
        %v917 = vunpack.c.l.s4 1934713408
        %v918 = vunpack.c.0.s8 %v917
        %v919 = vlaneseq
        %v920 = vshrl.u32 %v919, 7
        %v921 = vsub.s32 %v918, %v920
        %v922 = vrot.slane %v899, %v921
        %v924 = vunpack.c.l.s4 1934713408
        %v925 = vunpack.c.0.s8 %v924
        %v926 = vlaneseq
        %v927 = vshrl.u32 %v926, 7
        %v928 = vsub.s32 %v925, %v927
        %v929 = vrot.slane %v915, %v928
        %v930 = vcombine.high %v907, 0.0
        %v931 = vcombine.high %v914, 0.0
        %v932 = vcombine.high %v922, 0.0
        %v933 = vcombine.high %v929, 0.0
        %v934 = vcombine.high %v254, 0.0
        %v936 = vunpack.c.l.s4 1983009808
        %v937 = vunpack.c.0.s8 %v936
        %v938 = vlaneseq
        %v939 = vshrl.u32 %v938, 7
        %v940 = vsub.s32 %v937, %v939
        %v941 = vrot.slane %v254, %v940
        %v943 = vunpack.c.l.s4 1983009808
        %v944 = vunpack.c.0.s8 %v943
        %v945 = vlaneseq
        %v946 = vshrl.u32 %v945, 7
        %v947 = vsub.s32 %v944, %v946
        %v948 = vrot.slane %v934, %v947
        %v949 = vcombine.high %v941, 0.0
        %v951 = vunpack.c.l.s4 1934713408
        %v952 = vunpack.c.0.s8 %v951
        %v953 = vlaneseq
        %v954 = vshrl.u32 %v953, 7
        %v955 = vsub.s32 %v952, %v954
        %v956 = vrot.slane %v941, %v955
        %v958 = vunpack.c.l.s4 1934713408
        %v959 = vunpack.c.0.s8 %v958
        %v960 = vlaneseq
        %v961 = vshrl.u32 %v960, 7
        %v962 = vsub.s32 %v959, %v961
        %v963 = vrot.slane %v949, %v962
        %v964 = vcombine.high %v948, 0.0
        %v966 = vunpack.c.l.s4 1934713408
        %v967 = vunpack.c.0.s8 %v966
        %v968 = vlaneseq
        %v969 = vshrl.u32 %v968, 7
        %v970 = vsub.s32 %v967, %v969
        %v971 = vrot.slane %v948, %v970
        %v973 = vunpack.c.l.s4 1934713408
        %v974 = vunpack.c.0.s8 %v973
        %v975 = vlaneseq
        %v976 = vshrl.u32 %v975, 7
        %v977 = vsub.s32 %v974, %v976
        %v978 = vrot.slane %v964, %v977
        %v979 = vcombine.high %v956, 0.0
        %v980 = vcombine.high %v963, 0.0
        %v981 = vcombine.high %v971, 0.0
        %v982 = vcombine.high %v978, 0.0
        %v983 = vcombine.high %v261, 0.0
        %v985 = vunpack.c.l.s4 1983009808
        %v986 = vunpack.c.0.s8 %v985
        %v987 = vlaneseq
        %v988 = vshrl.u32 %v987, 7
        %v989 = vsub.s32 %v986, %v988
        %v990 = vrot.slane %v261, %v989
        %v992 = vunpack.c.l.s4 1983009808
        %v993 = vunpack.c.0.s8 %v992
        %v994 = vlaneseq
        %v995 = vshrl.u32 %v994, 7
        %v996 = vsub.s32 %v993, %v995
        %v997 = vrot.slane %v983, %v996
        %v998 = vcombine.high %v990, 0.0
        %v1000 = vunpack.c.l.s4 1934713408
        %v1001 = vunpack.c.0.s8 %v1000
        %v1002 = vlaneseq
        %v1003 = vshrl.u32 %v1002, 7
        %v1004 = vsub.s32 %v1001, %v1003
        %v1005 = vrot.slane %v990, %v1004
        %v1007 = vunpack.c.l.s4 1934713408
        %v1008 = vunpack.c.0.s8 %v1007
        %v1009 = vlaneseq
        %v1010 = vshrl.u32 %v1009, 7
        %v1011 = vsub.s32 %v1008, %v1010
        %v1012 = vrot.slane %v998, %v1011
        %v1013 = vcombine.high %v997, 0.0
        %v1015 = vunpack.c.l.s4 1934713408
        %v1016 = vunpack.c.0.s8 %v1015
        %v1017 = vlaneseq
        %v1018 = vshrl.u32 %v1017, 7
        %v1019 = vsub.s32 %v1016, %v1018
        %v1020 = vrot.slane %v997, %v1019
        %v1022 = vunpack.c.l.s4 1934713408
        %v1023 = vunpack.c.0.s8 %v1022
        %v1024 = vlaneseq
        %v1025 = vshrl.u32 %v1024, 7
        %v1026 = vsub.s32 %v1023, %v1025
        %v1027 = vrot.slane %v1013, %v1026
        %v1028 = vcombine.high %v1005, 0.0
        %v1029 = vcombine.high %v1012, 0.0
        %v1030 = vcombine.high %v1020, 0.0
        %v1031 = vcombine.high %v1027, 0.0
        %v1032 = vcombine.high %v268, 0.0
        %v1034 = vunpack.c.l.s4 1983009808
        %v1035 = vunpack.c.0.s8 %v1034
        %v1036 = vlaneseq
        %v1037 = vshrl.u32 %v1036, 7
        %v1038 = vsub.s32 %v1035, %v1037
        %v1039 = vrot.slane %v268, %v1038
        %v1041 = vunpack.c.l.s4 1983009808
        %v1042 = vunpack.c.0.s8 %v1041
        %v1043 = vlaneseq
        %v1044 = vshrl.u32 %v1043, 7
        %v1045 = vsub.s32 %v1042, %v1044
        %v1046 = vrot.slane %v1032, %v1045
        %v1047 = vcombine.high %v1039, 0.0
        %v1049 = vunpack.c.l.s4 1934713408
        %v1050 = vunpack.c.0.s8 %v1049
        %v1051 = vlaneseq
        %v1052 = vshrl.u32 %v1051, 7
        %v1053 = vsub.s32 %v1050, %v1052
        %v1054 = vrot.slane %v1039, %v1053
        %v1056 = vunpack.c.l.s4 1934713408
        %v1057 = vunpack.c.0.s8 %v1056
        %v1058 = vlaneseq
        %v1059 = vshrl.u32 %v1058, 7
        %v1060 = vsub.s32 %v1057, %v1059
        %v1061 = vrot.slane %v1047, %v1060
        %v1062 = vcombine.high %v1046, 0.0
        %v1064 = vunpack.c.l.s4 1934713408
        %v1065 = vunpack.c.0.s8 %v1064
        %v1066 = vlaneseq
        %v1067 = vshrl.u32 %v1066, 7
        %v1068 = vsub.s32 %v1065, %v1067
        %v1069 = vrot.slane %v1046, %v1068
        %v1071 = vunpack.c.l.s4 1934713408
        %v1072 = vunpack.c.0.s8 %v1071
        %v1073 = vlaneseq
        %v1074 = vshrl.u32 %v1073, 7
        %v1075 = vsub.s32 %v1072, %v1074
        %v1076 = vrot.slane %v1062, %v1075
        %v1077 = vcombine.high %v1054, 0.0
        %v1078 = vcombine.high %v1061, 0.0
        %v1079 = vcombine.high %v1069, 0.0
        %v1080 = vcombine.high %v1076, 0.0
        %v1081 = vcombine.high %v275, 0.0
        %v1083 = vunpack.c.l.s4 1983009808
        %v1084 = vunpack.c.0.s8 %v1083
        %v1085 = vlaneseq
        %v1086 = vshrl.u32 %v1085, 7
        %v1087 = vsub.s32 %v1084, %v1086
        %v1088 = vrot.slane %v275, %v1087
        %v1090 = vunpack.c.l.s4 1983009808
        %v1091 = vunpack.c.0.s8 %v1090
        %v1092 = vlaneseq
        %v1093 = vshrl.u32 %v1092, 7
        %v1094 = vsub.s32 %v1091, %v1093
        %v1095 = vrot.slane %v1081, %v1094
        %v1096 = vcombine.high %v1088, 0.0
        %v1098 = vunpack.c.l.s4 1934713408
        %v1099 = vunpack.c.0.s8 %v1098
        %v1100 = vlaneseq
        %v1101 = vshrl.u32 %v1100, 7
        %v1102 = vsub.s32 %v1099, %v1101
        %v1103 = vrot.slane %v1088, %v1102
        %v1105 = vunpack.c.l.s4 1934713408
        %v1106 = vunpack.c.0.s8 %v1105
        %v1107 = vlaneseq
        %v1108 = vshrl.u32 %v1107, 7
        %v1109 = vsub.s32 %v1106, %v1108
        %v1110 = vrot.slane %v1096, %v1109
        %v1111 = vcombine.high %v1095, 0.0
        %v1113 = vunpack.c.l.s4 1934713408
        %v1114 = vunpack.c.0.s8 %v1113
        %v1115 = vlaneseq
        %v1116 = vshrl.u32 %v1115, 7
        %v1117 = vsub.s32 %v1114, %v1116
        %v1118 = vrot.slane %v1095, %v1117
        %v1120 = vunpack.c.l.s4 1934713408
        %v1121 = vunpack.c.0.s8 %v1120
        %v1122 = vlaneseq
        %v1123 = vshrl.u32 %v1122, 7
        %v1124 = vsub.s32 %v1121, %v1123
        %v1125 = vrot.slane %v1111, %v1124
        %v1126 = vcombine.high %v1103, 0.0
        %v1127 = vcombine.high %v1110, 0.0
        %v1128 = vcombine.high %v1118, 0.0
        %v1129 = vcombine.high %v1125, 0.0
        %v1130 = vcombine.high %v282, 0.0
        %v1132 = vunpack.c.l.s4 1983009808
        %v1133 = vunpack.c.0.s8 %v1132
        %v1134 = vlaneseq
        %v1135 = vshrl.u32 %v1134, 7
        %v1136 = vsub.s32 %v1133, %v1135
        %v1137 = vrot.slane %v282, %v1136
        %v1139 = vunpack.c.l.s4 1983009808
        %v1140 = vunpack.c.0.s8 %v1139
        %v1141 = vlaneseq
        %v1142 = vshrl.u32 %v1141, 7
        %v1143 = vsub.s32 %v1140, %v1142
        %v1144 = vrot.slane %v1130, %v1143
        %v1145 = vcombine.high %v1137, 0.0
        %v1147 = vunpack.c.l.s4 1934713408
        %v1148 = vunpack.c.0.s8 %v1147
        %v1149 = vlaneseq
        %v1150 = vshrl.u32 %v1149, 7
        %v1151 = vsub.s32 %v1148, %v1150
        %v1152 = vrot.slane %v1137, %v1151
        %v1154 = vunpack.c.l.s4 1934713408
        %v1155 = vunpack.c.0.s8 %v1154
        %v1156 = vlaneseq
        %v1157 = vshrl.u32 %v1156, 7
        %v1158 = vsub.s32 %v1155, %v1157
        %v1159 = vrot.slane %v1145, %v1158
        %v1160 = vcombine.high %v1144, 0.0
        %v1162 = vunpack.c.l.s4 1934713408
        %v1163 = vunpack.c.0.s8 %v1162
        %v1164 = vlaneseq
        %v1165 = vshrl.u32 %v1164, 7
        %v1166 = vsub.s32 %v1163, %v1165
        %v1167 = vrot.slane %v1144, %v1166
        %v1169 = vunpack.c.l.s4 1934713408
        %v1170 = vunpack.c.0.s8 %v1169
        %v1171 = vlaneseq
        %v1172 = vshrl.u32 %v1171, 7
        %v1173 = vsub.s32 %v1170, %v1172
        %v1174 = vrot.slane %v1160, %v1173
        %v1175 = vcombine.high %v1152, 0.0
        %v1176 = vcombine.high %v1159, 0.0
        %v1177 = vcombine.high %v1167, 0.0
        %v1178 = vcombine.high %v1174, 0.0
        %v1179 = vcombine.high %v289, 0.0
        %v1181 = vunpack.c.l.s4 1983009808
        %v1182 = vunpack.c.0.s8 %v1181
        %v1183 = vlaneseq
        %v1184 = vshrl.u32 %v1183, 7
        %v1185 = vsub.s32 %v1182, %v1184
        %v1186 = vrot.slane %v289, %v1185
        %v1188 = vunpack.c.l.s4 1983009808
        %v1189 = vunpack.c.0.s8 %v1188
        %v1190 = vlaneseq
        %v1191 = vshrl.u32 %v1190, 7
        %v1192 = vsub.s32 %v1189, %v1191
        %v1193 = vrot.slane %v1179, %v1192
        %v1194 = vcombine.high %v1186, 0.0
        %v1196 = vunpack.c.l.s4 1934713408
        %v1197 = vunpack.c.0.s8 %v1196
        %v1198 = vlaneseq
        %v1199 = vshrl.u32 %v1198, 7
        %v1200 = vsub.s32 %v1197, %v1199
        %v1201 = vrot.slane %v1186, %v1200
        %v1203 = vunpack.c.l.s4 1934713408
        %v1204 = vunpack.c.0.s8 %v1203
        %v1205 = vlaneseq
        %v1206 = vshrl.u32 %v1205, 7
        %v1207 = vsub.s32 %v1204, %v1206
        %v1208 = vrot.slane %v1194, %v1207
        %v1209 = vcombine.high %v1193, 0.0
        %v1211 = vunpack.c.l.s4 1934713408
        %v1212 = vunpack.c.0.s8 %v1211
        %v1213 = vlaneseq
        %v1214 = vshrl.u32 %v1213, 7
        %v1215 = vsub.s32 %v1212, %v1214
        %v1216 = vrot.slane %v1193, %v1215
        %v1218 = vunpack.c.l.s4 1934713408
        %v1219 = vunpack.c.0.s8 %v1218
        %v1220 = vlaneseq
        %v1221 = vshrl.u32 %v1220, 7
        %v1222 = vsub.s32 %v1219, %v1221
        %v1223 = vrot.slane %v1209, %v1222
        %v1224 = vcombine.high %v1201, 0.0
        %v1225 = vcombine.high %v1208, 0.0
        %v1226 = vcombine.high %v1216, 0.0
        %v1227 = vcombine.high %v1223, 0.0
        %v1228 = vcombine.high %v296, 0.0
        %v1230 = vunpack.c.l.s4 1983009808
        %v1231 = vunpack.c.0.s8 %v1230
        %v1232 = vlaneseq
        %v1233 = vshrl.u32 %v1232, 7
        %v1234 = vsub.s32 %v1231, %v1233
        %v1235 = vrot.slane %v296, %v1234
        %v1237 = vunpack.c.l.s4 1983009808
        %v1238 = vunpack.c.0.s8 %v1237
        %v1239 = vlaneseq
        %v1240 = vshrl.u32 %v1239, 7
        %v1241 = vsub.s32 %v1238, %v1240
        %v1242 = vrot.slane %v1228, %v1241
        %v1243 = vcombine.high %v1235, 0.0
        %v1245 = vunpack.c.l.s4 1934713408
        %v1246 = vunpack.c.0.s8 %v1245
        %v1247 = vlaneseq
        %v1248 = vshrl.u32 %v1247, 7
        %v1249 = vsub.s32 %v1246, %v1248
        %v1250 = vrot.slane %v1235, %v1249
        %v1252 = vunpack.c.l.s4 1934713408
        %v1253 = vunpack.c.0.s8 %v1252
        %v1254 = vlaneseq
        %v1255 = vshrl.u32 %v1254, 7
        %v1256 = vsub.s32 %v1253, %v1255
        %v1257 = vrot.slane %v1243, %v1256
        %v1258 = vcombine.high %v1242, 0.0
        %v1260 = vunpack.c.l.s4 1934713408
        %v1261 = vunpack.c.0.s8 %v1260
        %v1262 = vlaneseq
        %v1263 = vshrl.u32 %v1262, 7
        %v1264 = vsub.s32 %v1261, %v1263
        %v1265 = vrot.slane %v1242, %v1264
        %v1267 = vunpack.c.l.s4 1934713408
        %v1268 = vunpack.c.0.s8 %v1267
        %v1269 = vlaneseq
        %v1270 = vshrl.u32 %v1269, 7
        %v1271 = vsub.s32 %v1268, %v1270
        %v1272 = vrot.slane %v1258, %v1271
        %v1273 = vcombine.high %v1250, 0.0
        %v1274 = vcombine.high %v1257, 0.0
        %v1275 = vcombine.high %v1265, 0.0
        %v1276 = vcombine.high %v1272, 0.0
        %v1277 = vcombine.high %v303, 0.0
        %v1279 = vunpack.c.l.s4 1983009808
        %v1280 = vunpack.c.0.s8 %v1279
        %v1281 = vlaneseq
        %v1282 = vshrl.u32 %v1281, 7
        %v1283 = vsub.s32 %v1280, %v1282
        %v1284 = vrot.slane %v303, %v1283
        %v1286 = vunpack.c.l.s4 1983009808
        %v1287 = vunpack.c.0.s8 %v1286
        %v1288 = vlaneseq
        %v1289 = vshrl.u32 %v1288, 7
        %v1290 = vsub.s32 %v1287, %v1289
        %v1291 = vrot.slane %v1277, %v1290
        %v1292 = vcombine.high %v1284, 0.0
        %v1294 = vunpack.c.l.s4 1934713408
        %v1295 = vunpack.c.0.s8 %v1294
        %v1296 = vlaneseq
        %v1297 = vshrl.u32 %v1296, 7
        %v1298 = vsub.s32 %v1295, %v1297
        %v1299 = vrot.slane %v1284, %v1298
        %v1301 = vunpack.c.l.s4 1934713408
        %v1302 = vunpack.c.0.s8 %v1301
        %v1303 = vlaneseq
        %v1304 = vshrl.u32 %v1303, 7
        %v1305 = vsub.s32 %v1302, %v1304
        %v1306 = vrot.slane %v1292, %v1305
        %v1307 = vcombine.high %v1291, 0.0
        %v1309 = vunpack.c.l.s4 1934713408
        %v1310 = vunpack.c.0.s8 %v1309
        %v1311 = vlaneseq
        %v1312 = vshrl.u32 %v1311, 7
        %v1313 = vsub.s32 %v1310, %v1312
        %v1314 = vrot.slane %v1291, %v1313
        %v1316 = vunpack.c.l.s4 1934713408
        %v1317 = vunpack.c.0.s8 %v1316
        %v1318 = vlaneseq
        %v1319 = vshrl.u32 %v1318, 7
        %v1320 = vsub.s32 %v1317, %v1319
        %v1321 = vrot.slane %v1307, %v1320
        %v1322 = vcombine.high %v1299, 0.0
        %v1323 = vcombine.high %v1306, 0.0
        %v1324 = vcombine.high %v1314, 0.0
        %v1325 = vcombine.high %v1321, 0.0
        %v1326 = vcombine.high %v310, 0.0
        %v1328 = vunpack.c.l.s4 1983009808
        %v1329 = vunpack.c.0.s8 %v1328
        %v1330 = vlaneseq
        %v1331 = vshrl.u32 %v1330, 7
        %v1332 = vsub.s32 %v1329, %v1331
        %v1333 = vrot.slane %v310, %v1332
        %v1335 = vunpack.c.l.s4 1983009808
        %v1336 = vunpack.c.0.s8 %v1335
        %v1337 = vlaneseq
        %v1338 = vshrl.u32 %v1337, 7
        %v1339 = vsub.s32 %v1336, %v1338
        %v1340 = vrot.slane %v1326, %v1339
        %v1341 = vcombine.high %v1333, 0.0
        %v1343 = vunpack.c.l.s4 1934713408
        %v1344 = vunpack.c.0.s8 %v1343
        %v1345 = vlaneseq
        %v1346 = vshrl.u32 %v1345, 7
        %v1347 = vsub.s32 %v1344, %v1346
        %v1348 = vrot.slane %v1333, %v1347
        %v1350 = vunpack.c.l.s4 1934713408
        %v1351 = vunpack.c.0.s8 %v1350
        %v1352 = vlaneseq
        %v1353 = vshrl.u32 %v1352, 7
        %v1354 = vsub.s32 %v1351, %v1353
        %v1355 = vrot.slane %v1341, %v1354
        %v1356 = vcombine.high %v1340, 0.0
        %v1358 = vunpack.c.l.s4 1934713408
        %v1359 = vunpack.c.0.s8 %v1358
        %v1360 = vlaneseq
        %v1361 = vshrl.u32 %v1360, 7
        %v1362 = vsub.s32 %v1359, %v1361
        %v1363 = vrot.slane %v1340, %v1362
        %v1365 = vunpack.c.l.s4 1934713408
        %v1366 = vunpack.c.0.s8 %v1365
        %v1367 = vlaneseq
        %v1368 = vshrl.u32 %v1367, 7
        %v1369 = vsub.s32 %v1366, %v1368
        %v1370 = vrot.slane %v1356, %v1369
        %v1371 = vcombine.high %v1348, 0.0
        %v1372 = vcombine.high %v1355, 0.0
        %v1373 = vcombine.high %v1363, 0.0
        %v1374 = vcombine.high %v1370, 0.0
        %v1375 = vcombine.high %v317, 0.0
        %v1377 = vunpack.c.l.s4 1983009808
        %v1378 = vunpack.c.0.s8 %v1377
        %v1379 = vlaneseq
        %v1380 = vshrl.u32 %v1379, 7
        %v1381 = vsub.s32 %v1378, %v1380
        %v1382 = vrot.slane %v317, %v1381
        %v1384 = vunpack.c.l.s4 1983009808
        %v1385 = vunpack.c.0.s8 %v1384
        %v1386 = vlaneseq
        %v1387 = vshrl.u32 %v1386, 7
        %v1388 = vsub.s32 %v1385, %v1387
        %v1389 = vrot.slane %v1375, %v1388
        %v1390 = vcombine.high %v1382, 0.0
        %v1392 = vunpack.c.l.s4 1934713408
        %v1393 = vunpack.c.0.s8 %v1392
        %v1394 = vlaneseq
        %v1395 = vshrl.u32 %v1394, 7
        %v1396 = vsub.s32 %v1393, %v1395
        %v1397 = vrot.slane %v1382, %v1396
        %v1399 = vunpack.c.l.s4 1934713408
        %v1400 = vunpack.c.0.s8 %v1399
        %v1401 = vlaneseq
        %v1402 = vshrl.u32 %v1401, 7
        %v1403 = vsub.s32 %v1400, %v1402
        %v1404 = vrot.slane %v1390, %v1403
        %v1405 = vcombine.high %v1389, 0.0
        %v1407 = vunpack.c.l.s4 1934713408
        %v1408 = vunpack.c.0.s8 %v1407
        %v1409 = vlaneseq
        %v1410 = vshrl.u32 %v1409, 7
        %v1411 = vsub.s32 %v1408, %v1410
        %v1412 = vrot.slane %v1389, %v1411
        %v1414 = vunpack.c.l.s4 1934713408
        %v1415 = vunpack.c.0.s8 %v1414
        %v1416 = vlaneseq
        %v1417 = vshrl.u32 %v1416, 7
        %v1418 = vsub.s32 %v1415, %v1417
        %v1419 = vrot.slane %v1405, %v1418
        %v1420 = vcombine.high %v1397, 0.0
        %v1421 = vcombine.high %v1404, 0.0
        %v1422 = vcombine.high %v1412, 0.0
        %v1423 = vcombine.high %v1419, 0.0
        %v1424 = vcombine.high %v324, 0.0
        %v1426 = vunpack.c.l.s4 1983009808
        %v1427 = vunpack.c.0.s8 %v1426
        %v1428 = vlaneseq
        %v1429 = vshrl.u32 %v1428, 7
        %v1430 = vsub.s32 %v1427, %v1429
        %v1431 = vrot.slane %v324, %v1430
        %v1433 = vunpack.c.l.s4 1983009808
        %v1434 = vunpack.c.0.s8 %v1433
        %v1435 = vlaneseq
        %v1436 = vshrl.u32 %v1435, 7
        %v1437 = vsub.s32 %v1434, %v1436
        %v1438 = vrot.slane %v1424, %v1437
        %v1439 = vcombine.high %v1431, 0.0
        %v1441 = vunpack.c.l.s4 1934713408
        %v1442 = vunpack.c.0.s8 %v1441
        %v1443 = vlaneseq
        %v1444 = vshrl.u32 %v1443, 7
        %v1445 = vsub.s32 %v1442, %v1444
        %v1446 = vrot.slane %v1431, %v1445
        %v1448 = vunpack.c.l.s4 1934713408
        %v1449 = vunpack.c.0.s8 %v1448
        %v1450 = vlaneseq
        %v1451 = vshrl.u32 %v1450, 7
        %v1452 = vsub.s32 %v1449, %v1451
        %v1453 = vrot.slane %v1439, %v1452
        %v1454 = vcombine.high %v1438, 0.0
        %v1456 = vunpack.c.l.s4 1934713408
        %v1457 = vunpack.c.0.s8 %v1456
        %v1458 = vlaneseq
        %v1459 = vshrl.u32 %v1458, 7
        %v1460 = vsub.s32 %v1457, %v1459
        %v1461 = vrot.slane %v1438, %v1460
        %v1463 = vunpack.c.l.s4 1934713408
        %v1464 = vunpack.c.0.s8 %v1463
        %v1465 = vlaneseq
        %v1466 = vshrl.u32 %v1465, 7
        %v1467 = vsub.s32 %v1464, %v1466
        %v1468 = vrot.slane %v1454, %v1467
        %v1469 = vcombine.high %v1446, 0.0
        %v1470 = vcombine.high %v1453, 0.0
        %v1471 = vcombine.high %v1461, 0.0
        %v1472 = vcombine.high %v1468, 0.0
        %v1473 = vcombine.high %v331, 0.0
        %v1475 = vunpack.c.l.s4 1983009808
        %v1476 = vunpack.c.0.s8 %v1475
        %v1477 = vlaneseq
        %v1478 = vshrl.u32 %v1477, 7
        %v1479 = vsub.s32 %v1476, %v1478
        %v1480 = vrot.slane %v331, %v1479
        %v1482 = vunpack.c.l.s4 1983009808
        %v1483 = vunpack.c.0.s8 %v1482
        %v1484 = vlaneseq
        %v1485 = vshrl.u32 %v1484, 7
        %v1486 = vsub.s32 %v1483, %v1485
        %v1487 = vrot.slane %v1473, %v1486
        %v1488 = vcombine.high %v1480, 0.0
        %v1490 = vunpack.c.l.s4 1934713408
        %v1491 = vunpack.c.0.s8 %v1490
        %v1492 = vlaneseq
        %v1493 = vshrl.u32 %v1492, 7
        %v1494 = vsub.s32 %v1491, %v1493
        %v1495 = vrot.slane %v1480, %v1494
        %v1497 = vunpack.c.l.s4 1934713408
        %v1498 = vunpack.c.0.s8 %v1497
        %v1499 = vlaneseq
        %v1500 = vshrl.u32 %v1499, 7
        %v1501 = vsub.s32 %v1498, %v1500
        %v1502 = vrot.slane %v1488, %v1501
        %v1503 = vcombine.high %v1487, 0.0
        %v1505 = vunpack.c.l.s4 1934713408
        %v1506 = vunpack.c.0.s8 %v1505
        %v1507 = vlaneseq
        %v1508 = vshrl.u32 %v1507, 7
        %v1509 = vsub.s32 %v1506, %v1508
        %v1510 = vrot.slane %v1487, %v1509
        %v1512 = vunpack.c.l.s4 1934713408
        %v1513 = vunpack.c.0.s8 %v1512
        %v1514 = vlaneseq
        %v1515 = vshrl.u32 %v1514, 7
        %v1516 = vsub.s32 %v1513, %v1515
        %v1517 = vrot.slane %v1503, %v1516
        %v1518 = vcombine.high %v1495, 0.0
        %v1519 = vcombine.high %v1502, 0.0
        %v1520 = vcombine.high %v1510, 0.0
        %v1521 = vcombine.high %v1517, 0.0
        %v1522 = vcombine.high %v338, 0.0
        %v1524 = vunpack.c.l.s4 1983009808
        %v1525 = vunpack.c.0.s8 %v1524
        %v1526 = vlaneseq
        %v1527 = vshrl.u32 %v1526, 7
        %v1528 = vsub.s32 %v1525, %v1527
        %v1529 = vrot.slane %v338, %v1528
        %v1531 = vunpack.c.l.s4 1983009808
        %v1532 = vunpack.c.0.s8 %v1531
        %v1533 = vlaneseq
        %v1534 = vshrl.u32 %v1533, 7
        %v1535 = vsub.s32 %v1532, %v1534
        %v1536 = vrot.slane %v1522, %v1535
        %v1537 = vcombine.high %v1529, 0.0
        %v1539 = vunpack.c.l.s4 1934713408
        %v1540 = vunpack.c.0.s8 %v1539
        %v1541 = vlaneseq
        %v1542 = vshrl.u32 %v1541, 7
        %v1543 = vsub.s32 %v1540, %v1542
        %v1544 = vrot.slane %v1529, %v1543
        %v1546 = vunpack.c.l.s4 1934713408
        %v1547 = vunpack.c.0.s8 %v1546
        %v1548 = vlaneseq
        %v1549 = vshrl.u32 %v1548, 7
        %v1550 = vsub.s32 %v1547, %v1549
        %v1551 = vrot.slane %v1537, %v1550
        %v1552 = vcombine.high %v1536, 0.0
        %v1554 = vunpack.c.l.s4 1934713408
        %v1555 = vunpack.c.0.s8 %v1554
        %v1556 = vlaneseq
        %v1557 = vshrl.u32 %v1556, 7
        %v1558 = vsub.s32 %v1555, %v1557
        %v1559 = vrot.slane %v1536, %v1558
        %v1561 = vunpack.c.l.s4 1934713408
        %v1562 = vunpack.c.0.s8 %v1561
        %v1563 = vlaneseq
        %v1564 = vshrl.u32 %v1563, 7
        %v1565 = vsub.s32 %v1562, %v1564
        %v1566 = vrot.slane %v1552, %v1565
        %v1567 = vcombine.high %v1544, 0.0
        %v1568 = vcombine.high %v1551, 0.0
        %v1569 = vcombine.high %v1559, 0.0
        %v1570 = vcombine.high %v1566, 0.0
        %v1571 = vcombine.high %v345, 0.0
        %v1573 = vunpack.c.l.s4 1983009808
        %v1574 = vunpack.c.0.s8 %v1573
        %v1575 = vlaneseq
        %v1576 = vshrl.u32 %v1575, 7
        %v1577 = vsub.s32 %v1574, %v1576
        %v1578 = vrot.slane %v345, %v1577
        %v1580 = vunpack.c.l.s4 1983009808
        %v1581 = vunpack.c.0.s8 %v1580
        %v1582 = vlaneseq
        %v1583 = vshrl.u32 %v1582, 7
        %v1584 = vsub.s32 %v1581, %v1583
        %v1585 = vrot.slane %v1571, %v1584
        %v1586 = vcombine.high %v1578, 0.0
        %v1588 = vunpack.c.l.s4 1934713408
        %v1589 = vunpack.c.0.s8 %v1588
        %v1590 = vlaneseq
        %v1591 = vshrl.u32 %v1590, 7
        %v1592 = vsub.s32 %v1589, %v1591
        %v1593 = vrot.slane %v1578, %v1592
        %v1595 = vunpack.c.l.s4 1934713408
        %v1596 = vunpack.c.0.s8 %v1595
        %v1597 = vlaneseq
        %v1598 = vshrl.u32 %v1597, 7
        %v1599 = vsub.s32 %v1596, %v1598
        %v1600 = vrot.slane %v1586, %v1599
        %v1601 = vcombine.high %v1585, 0.0
        %v1603 = vunpack.c.l.s4 1934713408
        %v1604 = vunpack.c.0.s8 %v1603
        %v1605 = vlaneseq
        %v1606 = vshrl.u32 %v1605, 7
        %v1607 = vsub.s32 %v1604, %v1606
        %v1608 = vrot.slane %v1585, %v1607
        %v1610 = vunpack.c.l.s4 1934713408
        %v1611 = vunpack.c.0.s8 %v1610
        %v1612 = vlaneseq
        %v1613 = vshrl.u32 %v1612, 7
        %v1614 = vsub.s32 %v1611, %v1613
        %v1615 = vrot.slane %v1601, %v1614
        %v1616 = vcombine.high %v1593, 0.0
        %v1617 = vcombine.high %v1600, 0.0
        %v1618 = vcombine.high %v1608, 0.0
        %v1619 = vcombine.high %v1615, 0.0
        %v1620 = vcombine.high %v352, 0.0
        %v1622 = vunpack.c.l.s4 1983009808
        %v1623 = vunpack.c.0.s8 %v1622
        %v1624 = vlaneseq
        %v1625 = vshrl.u32 %v1624, 7
        %v1626 = vsub.s32 %v1623, %v1625
        %v1627 = vrot.slane %v352, %v1626
        %v1629 = vunpack.c.l.s4 1983009808
        %v1630 = vunpack.c.0.s8 %v1629
        %v1631 = vlaneseq
        %v1632 = vshrl.u32 %v1631, 7
        %v1633 = vsub.s32 %v1630, %v1632
        %v1634 = vrot.slane %v1620, %v1633
        %v1635 = vcombine.high %v1627, 0.0
        %v1637 = vunpack.c.l.s4 1934713408
        %v1638 = vunpack.c.0.s8 %v1637
        %v1639 = vlaneseq
        %v1640 = vshrl.u32 %v1639, 7
        %v1641 = vsub.s32 %v1638, %v1640
        %v1642 = vrot.slane %v1627, %v1641
        %v1644 = vunpack.c.l.s4 1934713408
        %v1645 = vunpack.c.0.s8 %v1644
        %v1646 = vlaneseq
        %v1647 = vshrl.u32 %v1646, 7
        %v1648 = vsub.s32 %v1645, %v1647
        %v1649 = vrot.slane %v1635, %v1648
        %v1650 = vcombine.high %v1634, 0.0
        %v1652 = vunpack.c.l.s4 1934713408
        %v1653 = vunpack.c.0.s8 %v1652
        %v1654 = vlaneseq
        %v1655 = vshrl.u32 %v1654, 7
        %v1656 = vsub.s32 %v1653, %v1655
        %v1657 = vrot.slane %v1634, %v1656
        %v1659 = vunpack.c.l.s4 1934713408
        %v1660 = vunpack.c.0.s8 %v1659
        %v1661 = vlaneseq
        %v1662 = vshrl.u32 %v1661, 7
        %v1663 = vsub.s32 %v1660, %v1662
        %v1664 = vrot.slane %v1650, %v1663
        %v1665 = vcombine.high %v1642, 0.0
        %v1666 = vcombine.high %v1649, 0.0
        %v1667 = vcombine.high %v1657, 0.0
        %v1668 = vcombine.high %v1664, 0.0
        %v1669 = vcombine.high %v359, 0.0
        %v1671 = vunpack.c.l.s4 1983009808
        %v1672 = vunpack.c.0.s8 %v1671
        %v1673 = vlaneseq
        %v1674 = vshrl.u32 %v1673, 7
        %v1675 = vsub.s32 %v1672, %v1674
        %v1676 = vrot.slane %v359, %v1675
        %v1678 = vunpack.c.l.s4 1983009808
        %v1679 = vunpack.c.0.s8 %v1678
        %v1680 = vlaneseq
        %v1681 = vshrl.u32 %v1680, 7
        %v1682 = vsub.s32 %v1679, %v1681
        %v1683 = vrot.slane %v1669, %v1682
        %v1684 = vcombine.high %v1676, 0.0
        %v1686 = vunpack.c.l.s4 1934713408
        %v1687 = vunpack.c.0.s8 %v1686
        %v1688 = vlaneseq
        %v1689 = vshrl.u32 %v1688, 7
        %v1690 = vsub.s32 %v1687, %v1689
        %v1691 = vrot.slane %v1676, %v1690
        %v1693 = vunpack.c.l.s4 1934713408
        %v1694 = vunpack.c.0.s8 %v1693
        %v1695 = vlaneseq
        %v1696 = vshrl.u32 %v1695, 7
        %v1697 = vsub.s32 %v1694, %v1696
        %v1698 = vrot.slane %v1684, %v1697
        %v1699 = vcombine.high %v1683, 0.0
        %v1701 = vunpack.c.l.s4 1934713408
        %v1702 = vunpack.c.0.s8 %v1701
        %v1703 = vlaneseq
        %v1704 = vshrl.u32 %v1703, 7
        %v1705 = vsub.s32 %v1702, %v1704
        %v1706 = vrot.slane %v1683, %v1705
        %v1708 = vunpack.c.l.s4 1934713408
        %v1709 = vunpack.c.0.s8 %v1708
        %v1710 = vlaneseq
        %v1711 = vshrl.u32 %v1710, 7
        %v1712 = vsub.s32 %v1709, %v1711
        %v1713 = vrot.slane %v1699, %v1712
        %v1714 = vcombine.high %v1691, 0.0
        %v1715 = vcombine.high %v1698, 0.0
        %v1716 = vcombine.high %v1706, 0.0
        %v1717 = vcombine.high %v1713, 0.0
        %v1718 = vcombine.high %v366, 0.0
        %v1720 = vunpack.c.l.s4 1983009808
        %v1721 = vunpack.c.0.s8 %v1720
        %v1722 = vlaneseq
        %v1723 = vshrl.u32 %v1722, 7
        %v1724 = vsub.s32 %v1721, %v1723
        %v1725 = vrot.slane %v366, %v1724
        %v1727 = vunpack.c.l.s4 1983009808
        %v1728 = vunpack.c.0.s8 %v1727
        %v1729 = vlaneseq
        %v1730 = vshrl.u32 %v1729, 7
        %v1731 = vsub.s32 %v1728, %v1730
        %v1732 = vrot.slane %v1718, %v1731
        %v1733 = vcombine.high %v1725, 0.0
        %v1735 = vunpack.c.l.s4 1934713408
        %v1736 = vunpack.c.0.s8 %v1735
        %v1737 = vlaneseq
        %v1738 = vshrl.u32 %v1737, 7
        %v1739 = vsub.s32 %v1736, %v1738
        %v1740 = vrot.slane %v1725, %v1739
        %v1742 = vunpack.c.l.s4 1934713408
        %v1743 = vunpack.c.0.s8 %v1742
        %v1744 = vlaneseq
        %v1745 = vshrl.u32 %v1744, 7
        %v1746 = vsub.s32 %v1743, %v1745
        %v1747 = vrot.slane %v1733, %v1746
        %v1748 = vcombine.high %v1732, 0.0
        %v1750 = vunpack.c.l.s4 1934713408
        %v1751 = vunpack.c.0.s8 %v1750
        %v1752 = vlaneseq
        %v1753 = vshrl.u32 %v1752, 7
        %v1754 = vsub.s32 %v1751, %v1753
        %v1755 = vrot.slane %v1732, %v1754
        %v1757 = vunpack.c.l.s4 1934713408
        %v1758 = vunpack.c.0.s8 %v1757
        %v1759 = vlaneseq
        %v1760 = vshrl.u32 %v1759, 7
        %v1761 = vsub.s32 %v1758, %v1760
        %v1762 = vrot.slane %v1748, %v1761
        %v1763 = vcombine.high %v1740, 0.0
        %v1764 = vcombine.high %v1747, 0.0
        %v1765 = vcombine.high %v1755, 0.0
        %v1766 = vcombine.high %v1762, 0.0
        %v1767 = vcombine.high %v373, 0.0
        %v1769 = vunpack.c.l.s4 1983009808
        %v1770 = vunpack.c.0.s8 %v1769
        %v1771 = vlaneseq
        %v1772 = vshrl.u32 %v1771, 7
        %v1773 = vsub.s32 %v1770, %v1772
        %v1774 = vrot.slane %v373, %v1773
        %v1776 = vunpack.c.l.s4 1983009808
        %v1777 = vunpack.c.0.s8 %v1776
        %v1778 = vlaneseq
        %v1779 = vshrl.u32 %v1778, 7
        %v1780 = vsub.s32 %v1777, %v1779
        %v1781 = vrot.slane %v1767, %v1780
        %v1782 = vcombine.high %v1774, 0.0
        %v1784 = vunpack.c.l.s4 1934713408
        %v1785 = vunpack.c.0.s8 %v1784
        %v1786 = vlaneseq
        %v1787 = vshrl.u32 %v1786, 7
        %v1788 = vsub.s32 %v1785, %v1787
        %v1789 = vrot.slane %v1774, %v1788
        %v1791 = vunpack.c.l.s4 1934713408
        %v1792 = vunpack.c.0.s8 %v1791
        %v1793 = vlaneseq
        %v1794 = vshrl.u32 %v1793, 7
        %v1795 = vsub.s32 %v1792, %v1794
        %v1796 = vrot.slane %v1782, %v1795
        %v1797 = vcombine.high %v1781, 0.0
        %v1799 = vunpack.c.l.s4 1934713408
        %v1800 = vunpack.c.0.s8 %v1799
        %v1801 = vlaneseq
        %v1802 = vshrl.u32 %v1801, 7
        %v1803 = vsub.s32 %v1800, %v1802
        %v1804 = vrot.slane %v1781, %v1803
        %v1806 = vunpack.c.l.s4 1934713408
        %v1807 = vunpack.c.0.s8 %v1806
        %v1808 = vlaneseq
        %v1809 = vshrl.u32 %v1808, 7
        %v1810 = vsub.s32 %v1807, %v1809
        %v1811 = vrot.slane %v1797, %v1810
        %v1812 = vcombine.high %v1789, 0.0
        %v1813 = vcombine.high %v1796, 0.0
        %v1814 = vcombine.high %v1804, 0.0
        %v1815 = vcombine.high %v1811, 0.0
        %v1816 = vcombine.high %v380, 0.0
        %v1818 = vunpack.c.l.s4 1983009808
        %v1819 = vunpack.c.0.s8 %v1818
        %v1820 = vlaneseq
        %v1821 = vshrl.u32 %v1820, 7
        %v1822 = vsub.s32 %v1819, %v1821
        %v1823 = vrot.slane %v380, %v1822
        %v1825 = vunpack.c.l.s4 1983009808
        %v1826 = vunpack.c.0.s8 %v1825
        %v1827 = vlaneseq
        %v1828 = vshrl.u32 %v1827, 7
        %v1829 = vsub.s32 %v1826, %v1828
        %v1830 = vrot.slane %v1816, %v1829
        %v1831 = vcombine.high %v1823, 0.0
        %v1833 = vunpack.c.l.s4 1934713408
        %v1834 = vunpack.c.0.s8 %v1833
        %v1835 = vlaneseq
        %v1836 = vshrl.u32 %v1835, 7
        %v1837 = vsub.s32 %v1834, %v1836
        %v1838 = vrot.slane %v1823, %v1837
        %v1840 = vunpack.c.l.s4 1934713408
        %v1841 = vunpack.c.0.s8 %v1840
        %v1842 = vlaneseq
        %v1843 = vshrl.u32 %v1842, 7
        %v1844 = vsub.s32 %v1841, %v1843
        %v1845 = vrot.slane %v1831, %v1844
        %v1846 = vcombine.high %v1830, 0.0
        %v1848 = vunpack.c.l.s4 1934713408
        %v1849 = vunpack.c.0.s8 %v1848
        %v1850 = vlaneseq
        %v1851 = vshrl.u32 %v1850, 7
        %v1852 = vsub.s32 %v1849, %v1851
        %v1853 = vrot.slane %v1830, %v1852
        %v1855 = vunpack.c.l.s4 1934713408
        %v1856 = vunpack.c.0.s8 %v1855
        %v1857 = vlaneseq
        %v1858 = vshrl.u32 %v1857, 7
        %v1859 = vsub.s32 %v1856, %v1858
        %v1860 = vrot.slane %v1846, %v1859
        %v1861 = vcombine.high %v1838, 0.0
        %v1862 = vcombine.high %v1845, 0.0
        %v1863 = vcombine.high %v1853, 0.0
        %v1864 = vcombine.high %v1860, 0.0
        %v1865 = vcombine.high %v387, 0.0
        %v1867 = vunpack.c.l.s4 1983009808
        %v1868 = vunpack.c.0.s8 %v1867
        %v1869 = vlaneseq
        %v1870 = vshrl.u32 %v1869, 7
        %v1871 = vsub.s32 %v1868, %v1870
        %v1872 = vrot.slane %v387, %v1871
        %v1874 = vunpack.c.l.s4 1983009808
        %v1875 = vunpack.c.0.s8 %v1874
        %v1876 = vlaneseq
        %v1877 = vshrl.u32 %v1876, 7
        %v1878 = vsub.s32 %v1875, %v1877
        %v1879 = vrot.slane %v1865, %v1878
        %v1880 = vcombine.high %v1872, 0.0
        %v1882 = vunpack.c.l.s4 1934713408
        %v1883 = vunpack.c.0.s8 %v1882
        %v1884 = vlaneseq
        %v1885 = vshrl.u32 %v1884, 7
        %v1886 = vsub.s32 %v1883, %v1885
        %v1887 = vrot.slane %v1872, %v1886
        %v1889 = vunpack.c.l.s4 1934713408
        %v1890 = vunpack.c.0.s8 %v1889
        %v1891 = vlaneseq
        %v1892 = vshrl.u32 %v1891, 7
        %v1893 = vsub.s32 %v1890, %v1892
        %v1894 = vrot.slane %v1880, %v1893
        %v1895 = vcombine.high %v1879, 0.0
        %v1897 = vunpack.c.l.s4 1934713408
        %v1898 = vunpack.c.0.s8 %v1897
        %v1899 = vlaneseq
        %v1900 = vshrl.u32 %v1899, 7
        %v1901 = vsub.s32 %v1898, %v1900
        %v1902 = vrot.slane %v1879, %v1901
        %v1904 = vunpack.c.l.s4 1934713408
        %v1905 = vunpack.c.0.s8 %v1904
        %v1906 = vlaneseq
        %v1907 = vshrl.u32 %v1906, 7
        %v1908 = vsub.s32 %v1905, %v1907
        %v1909 = vrot.slane %v1895, %v1908
        %v1910 = vcombine.high %v1887, 0.0
        %v1911 = vcombine.high %v1894, 0.0
        %v1912 = vcombine.high %v1902, 0.0
        %v1913 = vcombine.high %v1909, 0.0
        %v1914 = vcombine.high %v394, 0.0
        %v1916 = vunpack.c.l.s4 1983009808
        %v1917 = vunpack.c.0.s8 %v1916
        %v1918 = vlaneseq
        %v1919 = vshrl.u32 %v1918, 7
        %v1920 = vsub.s32 %v1917, %v1919
        %v1921 = vrot.slane %v394, %v1920
        %v1923 = vunpack.c.l.s4 1983009808
        %v1924 = vunpack.c.0.s8 %v1923
        %v1925 = vlaneseq
        %v1926 = vshrl.u32 %v1925, 7
        %v1927 = vsub.s32 %v1924, %v1926
        %v1928 = vrot.slane %v1914, %v1927
        %v1929 = vcombine.high %v1921, 0.0
        %v1931 = vunpack.c.l.s4 1934713408
        %v1932 = vunpack.c.0.s8 %v1931
        %v1933 = vlaneseq
        %v1934 = vshrl.u32 %v1933, 7
        %v1935 = vsub.s32 %v1932, %v1934
        %v1936 = vrot.slane %v1921, %v1935
        %v1938 = vunpack.c.l.s4 1934713408
        %v1939 = vunpack.c.0.s8 %v1938
        %v1940 = vlaneseq
        %v1941 = vshrl.u32 %v1940, 7
        %v1942 = vsub.s32 %v1939, %v1941
        %v1943 = vrot.slane %v1929, %v1942
        %v1944 = vcombine.high %v1928, 0.0
        %v1946 = vunpack.c.l.s4 1934713408
        %v1947 = vunpack.c.0.s8 %v1946
        %v1948 = vlaneseq
        %v1949 = vshrl.u32 %v1948, 7
        %v1950 = vsub.s32 %v1947, %v1949
        %v1951 = vrot.slane %v1928, %v1950
        %v1953 = vunpack.c.l.s4 1934713408
        %v1954 = vunpack.c.0.s8 %v1953
        %v1955 = vlaneseq
        %v1956 = vshrl.u32 %v1955, 7
        %v1957 = vsub.s32 %v1954, %v1956
        %v1958 = vrot.slane %v1944, %v1957
        %v1959 = vcombine.high %v1936, 0.0
        %v1960 = vcombine.high %v1943, 0.0
        %v1961 = vcombine.high %v1951, 0.0
        %v1962 = vcombine.high %v1958, 0.0
        %1995 = vrot.lane.b32.xlu0 %v440, 2
        %v1996 = vpop.permute.xlu0 %1995
        %1997 = vrot.lane.b32.xlu0 %v489, 2
        %v1998 = vpop.permute.xlu0 %1997
        %1999 = vrot.lane.b32.xlu0 %v538, 2
        %v2000 = vpop.permute.xlu0 %1999
        %2001 = vrot.lane.b32.xlu0 %v587, 2
        %v2002 = vpop.permute.xlu0 %2001
        %2003 = vrot.lane.b32.xlu0 %v636, 2
        %v2004 = vpop.permute.xlu0 %2003
        %2005 = vrot.lane.b32.xlu0 %v685, 2
        %v2006 = vpop.permute.xlu0 %2005
        %2007 = vrot.lane.b32.xlu0 %v734, 2
        %v2008 = vpop.permute.xlu0 %2007
        %2009 = vrot.lane.b32.xlu0 %v783, 2
        %v2010 = vpop.permute.xlu0 %2009
        %2011 = vrot.lane.b32.xlu0 %v832, 2
        %v2012 = vpop.permute.xlu0 %2011
        %2013 = vrot.lane.b32.xlu0 %v881, 2
        %v2014 = vpop.permute.xlu0 %2013
        %2015 = vrot.lane.b32.xlu0 %v930, 2
        %v2016 = vpop.permute.xlu0 %2015
        %2017 = vrot.lane.b32.xlu0 %v979, 2
        %v2018 = vpop.permute.xlu0 %2017
        %2019 = vrot.lane.b32.xlu0 %v1028, 2
        %v2020 = vpop.permute.xlu0 %2019
        %2021 = vrot.lane.b32.xlu0 %v1077, 2
        %v2022 = vpop.permute.xlu0 %2021
        %2023 = vrot.lane.b32.xlu0 %v1126, 2
        %v2024 = vpop.permute.xlu0 %2023
        %2025 = vrot.lane.b32.xlu0 %v1175, 2
        %v2026 = vpop.permute.xlu0 %2025
        %2027 = vrot.lane.b32.xlu0 %v1224, 2
        %v2028 = vpop.permute.xlu0 %2027
        %2029 = vrot.lane.b32.xlu0 %v1273, 2
        %v2030 = vpop.permute.xlu0 %2029
        %2031 = vrot.lane.b32.xlu0 %v1322, 2
        %v2032 = vpop.permute.xlu0 %2031
        %2033 = vrot.lane.b32.xlu0 %v1371, 2
        %v2034 = vpop.permute.xlu0 %2033
        %2035 = vrot.lane.b32.xlu0 %v1420, 2
        %v2036 = vpop.permute.xlu0 %2035
        %2037 = vrot.lane.b32.xlu0 %v1469, 2
        %v2038 = vpop.permute.xlu0 %2037
        %2039 = vrot.lane.b32.xlu0 %v1518, 2
        %v2040 = vpop.permute.xlu0 %2039
        %2041 = vrot.lane.b32.xlu0 %v1567, 2
        %v2042 = vpop.permute.xlu0 %2041
        %2043 = vrot.lane.b32.xlu0 %v1616, 2
        %v2044 = vpop.permute.xlu0 %2043
        %2045 = vrot.lane.b32.xlu0 %v1665, 2
        %v2046 = vpop.permute.xlu0 %2045
        %2047 = vrot.lane.b32.xlu0 %v1714, 2
        %v2048 = vpop.permute.xlu0 %2047
        %2049 = vrot.lane.b32.xlu0 %v1763, 2
        %v2050 = vpop.permute.xlu0 %2049
        %2051 = vrot.lane.b32.xlu0 %v1812, 2
        %v2052 = vpop.permute.xlu0 %2051
        %2053 = vrot.lane.b32.xlu0 %v1861, 2
        %v2054 = vpop.permute.xlu0 %2053
        %2055 = vrot.lane.b32.xlu0 %v1910, 2
        %v2056 = vpop.permute.xlu0 %2055
        %2057 = vrot.lane.b32.xlu0 %v1959, 2
        %v2058 = vpop.permute.xlu0 %2057
        %2123 = vrot.lane.b32.xlu0 %v424, 4
        %v2124 = vpop.permute.xlu0 %2123
        %2125 = vrot.lane.b32.xlu0 %v473, 4
        %v2126 = vpop.permute.xlu0 %2125
        %2127 = vrot.lane.b32.xlu0 %v522, 4
        %v2128 = vpop.permute.xlu0 %2127
        %2129 = vrot.lane.b32.xlu0 %v571, 4
        %v2130 = vpop.permute.xlu0 %2129
        %2131 = vrot.lane.b32.xlu0 %v620, 4
        %v2132 = vpop.permute.xlu0 %2131
        %2133 = vrot.lane.b32.xlu0 %v669, 4
        %v2134 = vpop.permute.xlu0 %2133
        %2135 = vrot.lane.b32.xlu0 %v718, 4
        %v2136 = vpop.permute.xlu0 %2135
        %2137 = vrot.lane.b32.xlu0 %v767, 4
        %v2138 = vpop.permute.xlu0 %2137
        %2139 = vrot.lane.b32.xlu0 %v816, 4
        %v2140 = vpop.permute.xlu0 %2139
        %2141 = vrot.lane.b32.xlu0 %v865, 4
        %v2142 = vpop.permute.xlu0 %2141
        %2143 = vrot.lane.b32.xlu0 %v914, 4
        %v2144 = vpop.permute.xlu0 %2143
        %2145 = vrot.lane.b32.xlu0 %v963, 4
        %v2146 = vpop.permute.xlu0 %2145
        %2147 = vrot.lane.b32.xlu0 %v1012, 4
        %v2148 = vpop.permute.xlu0 %2147
        %2149 = vrot.lane.b32.xlu0 %v1061, 4
        %v2150 = vpop.permute.xlu0 %2149
        %2151 = vrot.lane.b32.xlu0 %v1110, 4
        %v2152 = vpop.permute.xlu0 %2151
        %2153 = vrot.lane.b32.xlu0 %v1159, 4
        %v2154 = vpop.permute.xlu0 %2153
        %2155 = vrot.lane.b32.xlu0 %v1208, 4
        %v2156 = vpop.permute.xlu0 %2155
        %2157 = vrot.lane.b32.xlu0 %v1257, 4
        %v2158 = vpop.permute.xlu0 %2157
        %2159 = vrot.lane.b32.xlu0 %v1306, 4
        %v2160 = vpop.permute.xlu0 %2159
        %2161 = vrot.lane.b32.xlu0 %v1355, 4
        %v2162 = vpop.permute.xlu0 %2161
        %2163 = vrot.lane.b32.xlu0 %v1404, 4
        %v2164 = vpop.permute.xlu0 %2163
        %2165 = vrot.lane.b32.xlu0 %v1453, 4
        %v2166 = vpop.permute.xlu0 %2165
        %2167 = vrot.lane.b32.xlu0 %v1502, 4
        %v2168 = vpop.permute.xlu0 %2167
        %2169 = vrot.lane.b32.xlu0 %v1551, 4
        %v2170 = vpop.permute.xlu0 %2169
        %2171 = vrot.lane.b32.xlu0 %v1600, 4
        %v2172 = vpop.permute.xlu0 %2171
        %2173 = vrot.lane.b32.xlu0 %v1649, 4
        %v2174 = vpop.permute.xlu0 %2173
        %2175 = vrot.lane.b32.xlu0 %v1698, 4
        %v2176 = vpop.permute.xlu0 %2175
        %2177 = vrot.lane.b32.xlu0 %v1747, 4
        %v2178 = vpop.permute.xlu0 %2177
        %2179 = vrot.lane.b32.xlu0 %v1796, 4
        %v2180 = vpop.permute.xlu0 %2179
        %2181 = vrot.lane.b32.xlu0 %v1845, 4
        %v2182 = vpop.permute.xlu0 %2181
        %2183 = vrot.lane.b32.xlu0 %v1894, 4
        %v2184 = vpop.permute.xlu0 %2183
        %2185 = vrot.lane.b32.xlu0 %v1943, 4
        %v2186 = vpop.permute.xlu0 %2185
        %2251 = vrot.lane.b32.xlu0 %v441, 6
        %v2252 = vpop.permute.xlu0 %2251
        %2253 = vrot.lane.b32.xlu0 %v490, 6
        %v2254 = vpop.permute.xlu0 %2253
        %2255 = vrot.lane.b32.xlu0 %v539, 6
        %v2256 = vpop.permute.xlu0 %2255
        %2257 = vrot.lane.b32.xlu0 %v588, 6
        %v2258 = vpop.permute.xlu0 %2257
        %2259 = vrot.lane.b32.xlu0 %v637, 6
        %v2260 = vpop.permute.xlu0 %2259
        %2261 = vrot.lane.b32.xlu0 %v686, 6
        %v2262 = vpop.permute.xlu0 %2261
        %2263 = vrot.lane.b32.xlu0 %v735, 6
        %v2264 = vpop.permute.xlu0 %2263
        %2265 = vrot.lane.b32.xlu0 %v784, 6
        %v2266 = vpop.permute.xlu0 %2265
        %2267 = vrot.lane.b32.xlu0 %v833, 6
        %v2268 = vpop.permute.xlu0 %2267
        %2269 = vrot.lane.b32.xlu0 %v882, 6
        %v2270 = vpop.permute.xlu0 %2269
        %2271 = vrot.lane.b32.xlu0 %v931, 6
        %v2272 = vpop.permute.xlu0 %2271
        %2273 = vrot.lane.b32.xlu0 %v980, 6
        %v2274 = vpop.permute.xlu0 %2273
        %2275 = vrot.lane.b32.xlu0 %v1029, 6
        %v2276 = vpop.permute.xlu0 %2275
        %2277 = vrot.lane.b32.xlu0 %v1078, 6
        %v2278 = vpop.permute.xlu0 %2277
        %2279 = vrot.lane.b32.xlu0 %v1127, 6
        %v2280 = vpop.permute.xlu0 %2279
        %2281 = vrot.lane.b32.xlu0 %v1176, 6
        %v2282 = vpop.permute.xlu0 %2281
        %2283 = vrot.lane.b32.xlu0 %v1225, 6
        %v2284 = vpop.permute.xlu0 %2283
        %2285 = vrot.lane.b32.xlu0 %v1274, 6
        %v2286 = vpop.permute.xlu0 %2285
        %2287 = vrot.lane.b32.xlu0 %v1323, 6
        %v2288 = vpop.permute.xlu0 %2287
        %2289 = vrot.lane.b32.xlu0 %v1372, 6
        %v2290 = vpop.permute.xlu0 %2289
        %2291 = vrot.lane.b32.xlu0 %v1421, 6
        %v2292 = vpop.permute.xlu0 %2291
        %2293 = vrot.lane.b32.xlu0 %v1470, 6
        %v2294 = vpop.permute.xlu0 %2293
        %2295 = vrot.lane.b32.xlu0 %v1519, 6
        %v2296 = vpop.permute.xlu0 %2295
        %2297 = vrot.lane.b32.xlu0 %v1568, 6
        %v2298 = vpop.permute.xlu0 %2297
        %2299 = vrot.lane.b32.xlu0 %v1617, 6
        %v2300 = vpop.permute.xlu0 %2299
        %2301 = vrot.lane.b32.xlu0 %v1666, 6
        %v2302 = vpop.permute.xlu0 %2301
        %2303 = vrot.lane.b32.xlu0 %v1715, 6
        %v2304 = vpop.permute.xlu0 %2303
        %2305 = vrot.lane.b32.xlu0 %v1764, 6
        %v2306 = vpop.permute.xlu0 %2305
        %2307 = vrot.lane.b32.xlu0 %v1813, 6
        %v2308 = vpop.permute.xlu0 %2307
        %2309 = vrot.lane.b32.xlu0 %v1862, 6
        %v2310 = vpop.permute.xlu0 %2309
        %2311 = vrot.lane.b32.xlu0 %v1911, 6
        %v2312 = vpop.permute.xlu0 %2311
        %2313 = vrot.lane.b32.xlu0 %v1960, 6
        %v2314 = vpop.permute.xlu0 %2313
        %2379 = vrot.lane.b32.xlu0 %v432, 8
        %v2380 = vpop.permute.xlu0 %2379
        %2381 = vrot.lane.b32.xlu0 %v481, 8
        %v2382 = vpop.permute.xlu0 %2381
        %2383 = vrot.lane.b32.xlu0 %v530, 8
        %v2384 = vpop.permute.xlu0 %2383
        %2385 = vrot.lane.b32.xlu0 %v579, 8
        %v2386 = vpop.permute.xlu0 %2385
        %2387 = vrot.lane.b32.xlu0 %v628, 8
        %v2388 = vpop.permute.xlu0 %2387
        %2389 = vrot.lane.b32.xlu0 %v677, 8
        %v2390 = vpop.permute.xlu0 %2389
        %2391 = vrot.lane.b32.xlu0 %v726, 8
        %v2392 = vpop.permute.xlu0 %2391
        %2393 = vrot.lane.b32.xlu0 %v775, 8
        %v2394 = vpop.permute.xlu0 %2393
        %2395 = vrot.lane.b32.xlu0 %v824, 8
        %v2396 = vpop.permute.xlu0 %2395
        %2397 = vrot.lane.b32.xlu0 %v873, 8
        %v2398 = vpop.permute.xlu0 %2397
        %2399 = vrot.lane.b32.xlu0 %v922, 8
        %v2400 = vpop.permute.xlu0 %2399
        %2401 = vrot.lane.b32.xlu0 %v971, 8
        %v2402 = vpop.permute.xlu0 %2401
        %2403 = vrot.lane.b32.xlu0 %v1020, 8
        %v2404 = vpop.permute.xlu0 %2403
        %2405 = vrot.lane.b32.xlu0 %v1069, 8
        %v2406 = vpop.permute.xlu0 %2405
        %2407 = vrot.lane.b32.xlu0 %v1118, 8
        %v2408 = vpop.permute.xlu0 %2407
        %2409 = vrot.lane.b32.xlu0 %v1167, 8
        %v2410 = vpop.permute.xlu0 %2409
        %2411 = vrot.lane.b32.xlu0 %v1216, 8
        %v2412 = vpop.permute.xlu0 %2411
        %2413 = vrot.lane.b32.xlu0 %v1265, 8
        %v2414 = vpop.permute.xlu0 %2413
        %2415 = vrot.lane.b32.xlu0 %v1314, 8
        %v2416 = vpop.permute.xlu0 %2415
        %2417 = vrot.lane.b32.xlu0 %v1363, 8
        %v2418 = vpop.permute.xlu0 %2417
        %2419 = vrot.lane.b32.xlu0 %v1412, 8
        %v2420 = vpop.permute.xlu0 %2419
        %2421 = vrot.lane.b32.xlu0 %v1461, 8
        %v2422 = vpop.permute.xlu0 %2421
        %2423 = vrot.lane.b32.xlu0 %v1510, 8
        %v2424 = vpop.permute.xlu0 %2423
        %2425 = vrot.lane.b32.xlu0 %v1559, 8
        %v2426 = vpop.permute.xlu0 %2425
        %2427 = vrot.lane.b32.xlu0 %v1608, 8
        %v2428 = vpop.permute.xlu0 %2427
        %2429 = vrot.lane.b32.xlu0 %v1657, 8
        %v2430 = vpop.permute.xlu0 %2429
        %2431 = vrot.lane.b32.xlu0 %v1706, 8
        %v2432 = vpop.permute.xlu0 %2431
        %2433 = vrot.lane.b32.xlu0 %v1755, 8
        %v2434 = vpop.permute.xlu0 %2433
        %2435 = vrot.lane.b32.xlu0 %v1804, 8
        %v2436 = vpop.permute.xlu0 %2435
        %2437 = vrot.lane.b32.xlu0 %v1853, 8
        %v2438 = vpop.permute.xlu0 %2437
        %2439 = vrot.lane.b32.xlu0 %v1902, 8
        %v2440 = vpop.permute.xlu0 %2439
        %2441 = vrot.lane.b32.xlu0 %v1951, 8
        %v2442 = vpop.permute.xlu0 %2441
        %2507 = vrot.lane.b32.xlu0 %v442, 10
        %v2508 = vpop.permute.xlu0 %2507
        %2509 = vrot.lane.b32.xlu0 %v491, 10
        %v2510 = vpop.permute.xlu0 %2509
        %2511 = vrot.lane.b32.xlu0 %v540, 10
        %v2512 = vpop.permute.xlu0 %2511
        %2513 = vrot.lane.b32.xlu0 %v589, 10
        %v2514 = vpop.permute.xlu0 %2513
        %2515 = vrot.lane.b32.xlu0 %v638, 10
        %v2516 = vpop.permute.xlu0 %2515
        %2517 = vrot.lane.b32.xlu0 %v687, 10
        %v2518 = vpop.permute.xlu0 %2517
        %2519 = vrot.lane.b32.xlu0 %v736, 10
        %v2520 = vpop.permute.xlu0 %2519
        %2521 = vrot.lane.b32.xlu0 %v785, 10
        %v2522 = vpop.permute.xlu0 %2521
        %2523 = vrot.lane.b32.xlu0 %v834, 10
        %v2524 = vpop.permute.xlu0 %2523
        %2525 = vrot.lane.b32.xlu0 %v883, 10
        %v2526 = vpop.permute.xlu0 %2525
        %2527 = vrot.lane.b32.xlu0 %v932, 10
        %v2528 = vpop.permute.xlu0 %2527
        %2529 = vrot.lane.b32.xlu0 %v981, 10
        %v2530 = vpop.permute.xlu0 %2529
        %2531 = vrot.lane.b32.xlu0 %v1030, 10
        %v2532 = vpop.permute.xlu0 %2531
        %2533 = vrot.lane.b32.xlu0 %v1079, 10
        %v2534 = vpop.permute.xlu0 %2533
        %2535 = vrot.lane.b32.xlu0 %v1128, 10
        %v2536 = vpop.permute.xlu0 %2535
        %2537 = vrot.lane.b32.xlu0 %v1177, 10
        %v2538 = vpop.permute.xlu0 %2537
        %2539 = vrot.lane.b32.xlu0 %v1226, 10
        %v2540 = vpop.permute.xlu0 %2539
        %2541 = vrot.lane.b32.xlu0 %v1275, 10
        %v2542 = vpop.permute.xlu0 %2541
        %2543 = vrot.lane.b32.xlu0 %v1324, 10
        %v2544 = vpop.permute.xlu0 %2543
        %2545 = vrot.lane.b32.xlu0 %v1373, 10
        %v2546 = vpop.permute.xlu0 %2545
        %2547 = vrot.lane.b32.xlu0 %v1422, 10
        %v2548 = vpop.permute.xlu0 %2547
        %2549 = vrot.lane.b32.xlu0 %v1471, 10
        %v2550 = vpop.permute.xlu0 %2549
        %2551 = vrot.lane.b32.xlu0 %v1520, 10
        %v2552 = vpop.permute.xlu0 %2551
        %2553 = vrot.lane.b32.xlu0 %v1569, 10
        %v2554 = vpop.permute.xlu0 %2553
        %2555 = vrot.lane.b32.xlu0 %v1618, 10
        %v2556 = vpop.permute.xlu0 %2555
        %2557 = vrot.lane.b32.xlu0 %v1667, 10
        %v2558 = vpop.permute.xlu0 %2557
        %2559 = vrot.lane.b32.xlu0 %v1716, 10
        %v2560 = vpop.permute.xlu0 %2559
        %2561 = vrot.lane.b32.xlu0 %v1765, 10
        %v2562 = vpop.permute.xlu0 %2561
        %2563 = vrot.lane.b32.xlu0 %v1814, 10
        %v2564 = vpop.permute.xlu0 %2563
        %2565 = vrot.lane.b32.xlu0 %v1863, 10
        %v2566 = vpop.permute.xlu0 %2565
        %2567 = vrot.lane.b32.xlu0 %v1912, 10
        %v2568 = vpop.permute.xlu0 %2567
        %2569 = vrot.lane.b32.xlu0 %v1961, 10
        %v2570 = vpop.permute.xlu0 %2569
        %2635 = vrot.lane.b32.xlu0 %v439, 12
        %v2636 = vpop.permute.xlu0 %2635
        %2637 = vrot.lane.b32.xlu0 %v488, 12
        %v2638 = vpop.permute.xlu0 %2637
        %2639 = vrot.lane.b32.xlu0 %v537, 12
        %v2640 = vpop.permute.xlu0 %2639
        %2641 = vrot.lane.b32.xlu0 %v586, 12
        %v2642 = vpop.permute.xlu0 %2641
        %2643 = vrot.lane.b32.xlu0 %v635, 12
        %v2644 = vpop.permute.xlu0 %2643
        %2645 = vrot.lane.b32.xlu0 %v684, 12
        %v2646 = vpop.permute.xlu0 %2645
        %2647 = vrot.lane.b32.xlu0 %v733, 12
        %v2648 = vpop.permute.xlu0 %2647
        %2649 = vrot.lane.b32.xlu0 %v782, 12
        %v2650 = vpop.permute.xlu0 %2649
        %2651 = vrot.lane.b32.xlu0 %v831, 12
        %v2652 = vpop.permute.xlu0 %2651
        %2653 = vrot.lane.b32.xlu0 %v880, 12
        %v2654 = vpop.permute.xlu0 %2653
        %2655 = vrot.lane.b32.xlu0 %v929, 12
        %v2656 = vpop.permute.xlu0 %2655
        %2657 = vrot.lane.b32.xlu0 %v978, 12
        %v2658 = vpop.permute.xlu0 %2657
        %2659 = vrot.lane.b32.xlu0 %v1027, 12
        %v2660 = vpop.permute.xlu0 %2659
        %2661 = vrot.lane.b32.xlu0 %v1076, 12
        %v2662 = vpop.permute.xlu0 %2661
        %2663 = vrot.lane.b32.xlu0 %v1125, 12
        %v2664 = vpop.permute.xlu0 %2663
        %2665 = vrot.lane.b32.xlu0 %v1174, 12
        %v2666 = vpop.permute.xlu0 %2665
        %2667 = vrot.lane.b32.xlu0 %v1223, 12
        %v2668 = vpop.permute.xlu0 %2667
        %2669 = vrot.lane.b32.xlu0 %v1272, 12
        %v2670 = vpop.permute.xlu0 %2669
        %2671 = vrot.lane.b32.xlu0 %v1321, 12
        %v2672 = vpop.permute.xlu0 %2671
        %2673 = vrot.lane.b32.xlu0 %v1370, 12
        %v2674 = vpop.permute.xlu0 %2673
        %2675 = vrot.lane.b32.xlu0 %v1419, 12
        %v2676 = vpop.permute.xlu0 %2675
        %2677 = vrot.lane.b32.xlu0 %v1468, 12
        %v2678 = vpop.permute.xlu0 %2677
        %2679 = vrot.lane.b32.xlu0 %v1517, 12
        %v2680 = vpop.permute.xlu0 %2679
        %2681 = vrot.lane.b32.xlu0 %v1566, 12
        %v2682 = vpop.permute.xlu0 %2681
        %2683 = vrot.lane.b32.xlu0 %v1615, 12
        %v2684 = vpop.permute.xlu0 %2683
        %2685 = vrot.lane.b32.xlu0 %v1664, 12
        %v2686 = vpop.permute.xlu0 %2685
        %2687 = vrot.lane.b32.xlu0 %v1713, 12
        %v2688 = vpop.permute.xlu0 %2687
        %2689 = vrot.lane.b32.xlu0 %v1762, 12
        %v2690 = vpop.permute.xlu0 %2689
        %2691 = vrot.lane.b32.xlu0 %v1811, 12
        %v2692 = vpop.permute.xlu0 %2691
        %2693 = vrot.lane.b32.xlu0 %v1860, 12
        %v2694 = vpop.permute.xlu0 %2693
        %2695 = vrot.lane.b32.xlu0 %v1909, 12
        %v2696 = vpop.permute.xlu0 %2695
        %2697 = vrot.lane.b32.xlu0 %v1958, 12
        %v2698 = vpop.permute.xlu0 %2697
        %2763 = vrot.lane.b32.xlu0 %v443, 14
        %v2764 = vpop.permute.xlu0 %2763
        %2765 = vrot.lane.b32.xlu0 %v492, 14
        %v2766 = vpop.permute.xlu0 %2765
        %2767 = vrot.lane.b32.xlu0 %v541, 14
        %v2768 = vpop.permute.xlu0 %2767
        %2769 = vrot.lane.b32.xlu0 %v590, 14
        %v2770 = vpop.permute.xlu0 %2769
        %2771 = vrot.lane.b32.xlu0 %v639, 14
        %v2772 = vpop.permute.xlu0 %2771
        %2773 = vrot.lane.b32.xlu0 %v688, 14
        %v2774 = vpop.permute.xlu0 %2773
        %2775 = vrot.lane.b32.xlu0 %v737, 14
        %v2776 = vpop.permute.xlu0 %2775
        %2777 = vrot.lane.b32.xlu0 %v786, 14
        %v2778 = vpop.permute.xlu0 %2777
        %2779 = vrot.lane.b32.xlu0 %v835, 14
        %v2780 = vpop.permute.xlu0 %2779
        %2781 = vrot.lane.b32.xlu0 %v884, 14
        %v2782 = vpop.permute.xlu0 %2781
        %2783 = vrot.lane.b32.xlu0 %v933, 14
        %v2784 = vpop.permute.xlu0 %2783
        %2785 = vrot.lane.b32.xlu0 %v982, 14
        %v2786 = vpop.permute.xlu0 %2785
        %2787 = vrot.lane.b32.xlu0 %v1031, 14
        %v2788 = vpop.permute.xlu0 %2787
        %2789 = vrot.lane.b32.xlu0 %v1080, 14
        %v2790 = vpop.permute.xlu0 %2789
        %2791 = vrot.lane.b32.xlu0 %v1129, 14
        %v2792 = vpop.permute.xlu0 %2791
        %2793 = vrot.lane.b32.xlu0 %v1178, 14
        %v2794 = vpop.permute.xlu0 %2793
        %2795 = vrot.lane.b32.xlu0 %v1227, 14
        %v2796 = vpop.permute.xlu0 %2795
        %2797 = vrot.lane.b32.xlu0 %v1276, 14
        %v2798 = vpop.permute.xlu0 %2797
        %2799 = vrot.lane.b32.xlu0 %v1325, 14
        %v2800 = vpop.permute.xlu0 %2799
        %2801 = vrot.lane.b32.xlu0 %v1374, 14
        %v2802 = vpop.permute.xlu0 %2801
        %2803 = vrot.lane.b32.xlu0 %v1423, 14
        %v2804 = vpop.permute.xlu0 %2803
        %2805 = vrot.lane.b32.xlu0 %v1472, 14
        %v2806 = vpop.permute.xlu0 %2805
        %2807 = vrot.lane.b32.xlu0 %v1521, 14
        %v2808 = vpop.permute.xlu0 %2807
        %2809 = vrot.lane.b32.xlu0 %v1570, 14
        %v2810 = vpop.permute.xlu0 %2809
        %2811 = vrot.lane.b32.xlu0 %v1619, 14
        %v2812 = vpop.permute.xlu0 %2811
        %2813 = vrot.lane.b32.xlu0 %v1668, 14
        %v2814 = vpop.permute.xlu0 %2813
        %2815 = vrot.lane.b32.xlu0 %v1717, 14
        %v2816 = vpop.permute.xlu0 %2815
        %2817 = vrot.lane.b32.xlu0 %v1766, 14
        %v2818 = vpop.permute.xlu0 %2817
        %2819 = vrot.lane.b32.xlu0 %v1815, 14
        %v2820 = vpop.permute.xlu0 %2819
        %2821 = vrot.lane.b32.xlu0 %v1864, 14
        %v2822 = vpop.permute.xlu0 %2821
        %2823 = vrot.lane.b32.xlu0 %v1913, 14
        %v2824 = vpop.permute.xlu0 %2823
        %2825 = vrot.lane.b32.xlu0 %v1962, 14
        %v2826 = vpop.permute.xlu0 %2825
        %vm2859 = vcmask 15360
        %v2860 = vsel %vm2859, %v417, %v1996
        %v2861 = vsel %vm2859, %v466, %v1998
        %v2862 = vsel %vm2859, %v515, %v2000
        %v2863 = vsel %vm2859, %v564, %v2002
        %v2864 = vsel %vm2859, %v613, %v2004
        %v2865 = vsel %vm2859, %v662, %v2006
        %v2866 = vsel %vm2859, %v711, %v2008
        %v2867 = vsel %vm2859, %v760, %v2010
        %v2868 = vsel %vm2859, %v809, %v2012
        %v2869 = vsel %vm2859, %v858, %v2014
        %v2870 = vsel %vm2859, %v907, %v2016
        %v2871 = vsel %vm2859, %v956, %v2018
        %v2872 = vsel %vm2859, %v1005, %v2020
        %v2873 = vsel %vm2859, %v1054, %v2022
        %v2874 = vsel %vm2859, %v1103, %v2024
        %v2875 = vsel %vm2859, %v1152, %v2026
        %v2876 = vsel %vm2859, %v1201, %v2028
        %v2877 = vsel %vm2859, %v1250, %v2030
        %v2878 = vsel %vm2859, %v1299, %v2032
        %v2879 = vsel %vm2859, %v1348, %v2034
        %v2880 = vsel %vm2859, %v1397, %v2036
        %v2881 = vsel %vm2859, %v1446, %v2038
        %v2882 = vsel %vm2859, %v1495, %v2040
        %v2883 = vsel %vm2859, %v1544, %v2042
        %v2884 = vsel %vm2859, %v1593, %v2044
        %v2885 = vsel %vm2859, %v1642, %v2046
        %v2886 = vsel %vm2859, %v1691, %v2048
        %v2887 = vsel %vm2859, %v1740, %v2050
        %v2888 = vsel %vm2859, %v1789, %v2052
        %v2889 = vsel %vm2859, %v1838, %v2054
        %v2890 = vsel %vm2859, %v1887, %v2056
        %v2891 = vsel %vm2859, %v1936, %v2058
        %vm2892 = vcmask 31744
        %v2893 = vsel %vm2892, %v2860, %v2124
        %v2894 = vsel %vm2892, %v2861, %v2126
        %v2895 = vsel %vm2892, %v2862, %v2128
        %v2896 = vsel %vm2892, %v2863, %v2130
        %v2897 = vsel %vm2892, %v2864, %v2132
        %v2898 = vsel %vm2892, %v2865, %v2134
        %v2899 = vsel %vm2892, %v2866, %v2136
        %v2900 = vsel %vm2892, %v2867, %v2138
        %v2901 = vsel %vm2892, %v2868, %v2140
        %v2902 = vsel %vm2892, %v2869, %v2142
        %v2903 = vsel %vm2892, %v2870, %v2144
        %v2904 = vsel %vm2892, %v2871, %v2146
        %v2905 = vsel %vm2892, %v2872, %v2148
        %v2906 = vsel %vm2892, %v2873, %v2150
        %v2907 = vsel %vm2892, %v2874, %v2152
        %v2908 = vsel %vm2892, %v2875, %v2154
        %v2909 = vsel %vm2892, %v2876, %v2156
        %v2910 = vsel %vm2892, %v2877, %v2158
        %v2911 = vsel %vm2892, %v2878, %v2160
        %v2912 = vsel %vm2892, %v2879, %v2162
        %v2913 = vsel %vm2892, %v2880, %v2164
        %v2914 = vsel %vm2892, %v2881, %v2166
        %v2915 = vsel %vm2892, %v2882, %v2168
        %v2916 = vsel %vm2892, %v2883, %v2170
        %v2917 = vsel %vm2892, %v2884, %v2172
        %v2918 = vsel %vm2892, %v2885, %v2174
        %v2919 = vsel %vm2892, %v2886, %v2176
        %v2920 = vsel %vm2892, %v2887, %v2178
        %v2921 = vsel %vm2892, %v2888, %v2180
        %v2922 = vsel %vm2892, %v2889, %v2182
        %v2923 = vsel %vm2892, %v2890, %v2184
        %v2924 = vsel %vm2892, %v2891, %v2186
        %vm2925 = vcmask 48128
        %v2926 = vsel %vm2925, %v2893, %v2252
        %v2927 = vsel %vm2925, %v2894, %v2254
        %v2928 = vsel %vm2925, %v2895, %v2256
        %v2929 = vsel %vm2925, %v2896, %v2258
        %v2930 = vsel %vm2925, %v2897, %v2260
        %v2931 = vsel %vm2925, %v2898, %v2262
        %v2932 = vsel %vm2925, %v2899, %v2264
        %v2933 = vsel %vm2925, %v2900, %v2266
        %v2934 = vsel %vm2925, %v2901, %v2268
        %v2935 = vsel %vm2925, %v2902, %v2270
        %v2936 = vsel %vm2925, %v2903, %v2272
        %v2937 = vsel %vm2925, %v2904, %v2274
        %v2938 = vsel %vm2925, %v2905, %v2276
        %v2939 = vsel %vm2925, %v2906, %v2278
        %v2940 = vsel %vm2925, %v2907, %v2280
        %v2941 = vsel %vm2925, %v2908, %v2282
        %v2942 = vsel %vm2925, %v2909, %v2284
        %v2943 = vsel %vm2925, %v2910, %v2286
        %v2944 = vsel %vm2925, %v2911, %v2288
        %v2945 = vsel %vm2925, %v2912, %v2290
        %v2946 = vsel %vm2925, %v2913, %v2292
        %v2947 = vsel %vm2925, %v2914, %v2294
        %v2948 = vsel %vm2925, %v2915, %v2296
        %v2949 = vsel %vm2925, %v2916, %v2298
        %v2950 = vsel %vm2925, %v2917, %v2300
        %v2951 = vsel %vm2925, %v2918, %v2302
        %v2952 = vsel %vm2925, %v2919, %v2304
        %v2953 = vsel %vm2925, %v2920, %v2306
        %v2954 = vsel %vm2925, %v2921, %v2308
        %v2955 = vsel %vm2925, %v2922, %v2310
        %v2956 = vsel %vm2925, %v2923, %v2312
        %v2957 = vsel %vm2925, %v2924, %v2314
        %vm2958 = vcmask 64512
        %v2959 = vsel %vm2958, %v2926, %v2380
        %v2960 = vsel %vm2958, %v2927, %v2382
        %v2961 = vsel %vm2958, %v2928, %v2384
        %v2962 = vsel %vm2958, %v2929, %v2386
        %v2963 = vsel %vm2958, %v2930, %v2388
        %v2964 = vsel %vm2958, %v2931, %v2390
        %v2965 = vsel %vm2958, %v2932, %v2392
        %v2966 = vsel %vm2958, %v2933, %v2394
        %v2967 = vsel %vm2958, %v2934, %v2396
        %v2968 = vsel %vm2958, %v2935, %v2398
        %v2969 = vsel %vm2958, %v2936, %v2400
        %v2970 = vsel %vm2958, %v2937, %v2402
        %v2971 = vsel %vm2958, %v2938, %v2404
        %v2972 = vsel %vm2958, %v2939, %v2406
        %v2973 = vsel %vm2958, %v2940, %v2408
        %v2974 = vsel %vm2958, %v2941, %v2410
        %v2975 = vsel %vm2958, %v2942, %v2412
        %v2976 = vsel %vm2958, %v2943, %v2414
        %v2977 = vsel %vm2958, %v2944, %v2416
        %v2978 = vsel %vm2958, %v2945, %v2418
        %v2979 = vsel %vm2958, %v2946, %v2420
        %v2980 = vsel %vm2958, %v2947, %v2422
        %v2981 = vsel %vm2958, %v2948, %v2424
        %v2982 = vsel %vm2958, %v2949, %v2426
        %v2983 = vsel %vm2958, %v2950, %v2428
        %v2984 = vsel %vm2958, %v2951, %v2430
        %v2985 = vsel %vm2958, %v2952, %v2432
        %v2986 = vsel %vm2958, %v2953, %v2434
        %v2987 = vsel %vm2958, %v2954, %v2436
        %v2988 = vsel %vm2958, %v2955, %v2438
        %v2989 = vsel %vm2958, %v2956, %v2440
        %v2990 = vsel %vm2958, %v2957, %v2442
        %vm2991 = vcmask 80896
        %v2992 = vsel %vm2991, %v2959, %v2508
        %v2993 = vsel %vm2991, %v2960, %v2510
        %v2994 = vsel %vm2991, %v2961, %v2512
        %v2995 = vsel %vm2991, %v2962, %v2514
        %v2996 = vsel %vm2991, %v2963, %v2516
        %v2997 = vsel %vm2991, %v2964, %v2518
        %v2998 = vsel %vm2991, %v2965, %v2520
        %v2999 = vsel %vm2991, %v2966, %v2522
        %v3000 = vsel %vm2991, %v2967, %v2524
        %v3001 = vsel %vm2991, %v2968, %v2526
        %v3002 = vsel %vm2991, %v2969, %v2528
        %v3003 = vsel %vm2991, %v2970, %v2530
        %v3004 = vsel %vm2991, %v2971, %v2532
        %v3005 = vsel %vm2991, %v2972, %v2534
        %v3006 = vsel %vm2991, %v2973, %v2536
        %v3007 = vsel %vm2991, %v2974, %v2538
        %v3008 = vsel %vm2991, %v2975, %v2540
        %v3009 = vsel %vm2991, %v2976, %v2542
        %v3010 = vsel %vm2991, %v2977, %v2544
        %v3011 = vsel %vm2991, %v2978, %v2546
        %v3012 = vsel %vm2991, %v2979, %v2548
        %v3013 = vsel %vm2991, %v2980, %v2550
        %v3014 = vsel %vm2991, %v2981, %v2552
        %v3015 = vsel %vm2991, %v2982, %v2554
        %v3016 = vsel %vm2991, %v2983, %v2556
        %v3017 = vsel %vm2991, %v2984, %v2558
        %v3018 = vsel %vm2991, %v2985, %v2560
        %v3019 = vsel %vm2991, %v2986, %v2562
        %v3020 = vsel %vm2991, %v2987, %v2564
        %v3021 = vsel %vm2991, %v2988, %v2566
        %v3022 = vsel %vm2991, %v2989, %v2568
        %v3023 = vsel %vm2991, %v2990, %v2570
        %vm3024 = vcmask 97280
        %v3025 = vsel %vm3024, %v2992, %v2636
        %v3026 = vsel %vm3024, %v2993, %v2638
        %v3027 = vsel %vm3024, %v2994, %v2640
        %v3028 = vsel %vm3024, %v2995, %v2642
        %v3029 = vsel %vm3024, %v2996, %v2644
        %v3030 = vsel %vm3024, %v2997, %v2646
        %v3031 = vsel %vm3024, %v2998, %v2648
        %v3032 = vsel %vm3024, %v2999, %v2650
        %v3033 = vsel %vm3024, %v3000, %v2652
        %v3034 = vsel %vm3024, %v3001, %v2654
        %v3035 = vsel %vm3024, %v3002, %v2656
        %v3036 = vsel %vm3024, %v3003, %v2658
        %v3037 = vsel %vm3024, %v3004, %v2660
        %v3038 = vsel %vm3024, %v3005, %v2662
        %v3039 = vsel %vm3024, %v3006, %v2664
        %v3040 = vsel %vm3024, %v3007, %v2666
        %v3041 = vsel %vm3024, %v3008, %v2668
        %v3042 = vsel %vm3024, %v3009, %v2670
        %v3043 = vsel %vm3024, %v3010, %v2672
        %v3044 = vsel %vm3024, %v3011, %v2674
        %v3045 = vsel %vm3024, %v3012, %v2676
        %v3046 = vsel %vm3024, %v3013, %v2678
        %v3047 = vsel %vm3024, %v3014, %v2680
        %v3048 = vsel %vm3024, %v3015, %v2682
        %v3049 = vsel %vm3024, %v3016, %v2684
        %v3050 = vsel %vm3024, %v3017, %v2686
        %v3051 = vsel %vm3024, %v3018, %v2688
        %v3052 = vsel %vm3024, %v3019, %v2690
        %v3053 = vsel %vm3024, %v3020, %v2692
        %v3054 = vsel %vm3024, %v3021, %v2694
        %v3055 = vsel %vm3024, %v3022, %v2696
        %v3056 = vsel %vm3024, %v3023, %v2698
        %vm3057 = vcmask 113664
        %v3058 = vsel %vm3057, %v3025, %v2764
        %v3059 = vsel %vm3057, %v3026, %v2766
        %v3060 = vsel %vm3057, %v3027, %v2768
        %v3061 = vsel %vm3057, %v3028, %v2770
        %v3062 = vsel %vm3057, %v3029, %v2772
        %v3063 = vsel %vm3057, %v3030, %v2774
        %v3064 = vsel %vm3057, %v3031, %v2776
        %v3065 = vsel %vm3057, %v3032, %v2778
        %v3066 = vsel %vm3057, %v3033, %v2780
        %v3067 = vsel %vm3057, %v3034, %v2782
        %v3068 = vsel %vm3057, %v3035, %v2784
        %v3069 = vsel %vm3057, %v3036, %v2786
        %v3070 = vsel %vm3057, %v3037, %v2788
        %v3071 = vsel %vm3057, %v3038, %v2790
        %v3072 = vsel %vm3057, %v3039, %v2792
        %v3073 = vsel %vm3057, %v3040, %v2794
        %v3074 = vsel %vm3057, %v3041, %v2796
        %v3075 = vsel %vm3057, %v3042, %v2798
        %v3076 = vsel %vm3057, %v3043, %v2800
        %v3077 = vsel %vm3057, %v3044, %v2802
        %v3078 = vsel %vm3057, %v3045, %v2804
        %v3079 = vsel %vm3057, %v3046, %v2806
        %v3080 = vsel %vm3057, %v3047, %v2808
        %v3081 = vsel %vm3057, %v3048, %v2810
        %v3082 = vsel %vm3057, %v3049, %v2812
        %v3083 = vsel %vm3057, %v3050, %v2814
        %v3084 = vsel %vm3057, %v3051, %v2816
        %v3085 = vsel %vm3057, %v3052, %v2818
        %v3086 = vsel %vm3057, %v3053, %v2820
        %v3087 = vsel %vm3057, %v3054, %v2822
        %v3088 = vsel %vm3057, %v3055, %v2824
        %v3089 = vsel %vm3057, %v3056, %v2826
        %v3090 = vlaneseq
        %v3091 = vshrl.u32 %v3090, 7
        %v3092 = vsub.s32 0, %v3091
        %v3093 = vrot.slane %v3058, %v3092
        %v3094 = vlaneseq
        %v3095 = vshrl.u32 %v3094, 7
        %v3096 = vsub.s32 0, %v3095
        %v3097 = vrot.slane %v3059, %v3096
        %v3098 = vlaneseq
        %v3099 = vshrl.u32 %v3098, 7
        %v3100 = vsub.s32 0, %v3099
        %v3101 = vrot.slane %v3060, %v3100
        %v3102 = vlaneseq
        %v3103 = vshrl.u32 %v3102, 7
        %v3104 = vsub.s32 0, %v3103
        %v3105 = vrot.slane %v3061, %v3104
        %v3106 = vlaneseq
        %v3107 = vshrl.u32 %v3106, 7
        %v3108 = vsub.s32 0, %v3107
        %v3109 = vrot.slane %v3062, %v3108
        %v3110 = vlaneseq
        %v3111 = vshrl.u32 %v3110, 7
        %v3112 = vsub.s32 0, %v3111
        %v3113 = vrot.slane %v3063, %v3112
        %v3114 = vlaneseq
        %v3115 = vshrl.u32 %v3114, 7
        %v3116 = vsub.s32 0, %v3115
        %v3117 = vrot.slane %v3064, %v3116
        %v3118 = vlaneseq
        %v3119 = vshrl.u32 %v3118, 7
        %v3120 = vsub.s32 0, %v3119
        %v3121 = vrot.slane %v3065, %v3120
        %v3122 = vlaneseq
        %v3123 = vshrl.u32 %v3122, 7
        %v3124 = vsub.s32 0, %v3123
        %v3125 = vrot.slane %v3066, %v3124
        %v3126 = vlaneseq
        %v3127 = vshrl.u32 %v3126, 7
        %v3128 = vsub.s32 0, %v3127
        %v3129 = vrot.slane %v3067, %v3128
        %v3130 = vlaneseq
        %v3131 = vshrl.u32 %v3130, 7
        %v3132 = vsub.s32 0, %v3131
        %v3133 = vrot.slane %v3068, %v3132
        %v3134 = vlaneseq
        %v3135 = vshrl.u32 %v3134, 7
        %v3136 = vsub.s32 0, %v3135
        %v3137 = vrot.slane %v3069, %v3136
        %v3138 = vlaneseq
        %v3139 = vshrl.u32 %v3138, 7
        %v3140 = vsub.s32 0, %v3139
        %v3141 = vrot.slane %v3070, %v3140
        %v3142 = vlaneseq
        %v3143 = vshrl.u32 %v3142, 7
        %v3144 = vsub.s32 0, %v3143
        %v3145 = vrot.slane %v3071, %v3144
        %v3146 = vlaneseq
        %v3147 = vshrl.u32 %v3146, 7
        %v3148 = vsub.s32 0, %v3147
        %v3149 = vrot.slane %v3072, %v3148
        %v3150 = vlaneseq
        %v3151 = vshrl.u32 %v3150, 7
        %v3152 = vsub.s32 0, %v3151
        %v3153 = vrot.slane %v3073, %v3152
        %v3154 = vlaneseq
        %v3155 = vshrl.u32 %v3154, 7
        %v3156 = vsub.s32 0, %v3155
        %v3157 = vrot.slane %v3074, %v3156
        %v3158 = vlaneseq
        %v3159 = vshrl.u32 %v3158, 7
        %v3160 = vsub.s32 0, %v3159
        %v3161 = vrot.slane %v3075, %v3160
        %v3162 = vlaneseq
        %v3163 = vshrl.u32 %v3162, 7
        %v3164 = vsub.s32 0, %v3163
        %v3165 = vrot.slane %v3076, %v3164
        %v3166 = vlaneseq
        %v3167 = vshrl.u32 %v3166, 7
        %v3168 = vsub.s32 0, %v3167
        %v3169 = vrot.slane %v3077, %v3168
        %v3170 = vlaneseq
        %v3171 = vshrl.u32 %v3170, 7
        %v3172 = vsub.s32 0, %v3171
        %v3173 = vrot.slane %v3078, %v3172
        %v3174 = vlaneseq
        %v3175 = vshrl.u32 %v3174, 7
        %v3176 = vsub.s32 0, %v3175
        %v3177 = vrot.slane %v3079, %v3176
        %v3178 = vlaneseq
        %v3179 = vshrl.u32 %v3178, 7
        %v3180 = vsub.s32 0, %v3179
        %v3181 = vrot.slane %v3080, %v3180
        %v3182 = vlaneseq
        %v3183 = vshrl.u32 %v3182, 7
        %v3184 = vsub.s32 0, %v3183
        %v3185 = vrot.slane %v3081, %v3184
        %v3186 = vlaneseq
        %v3187 = vshrl.u32 %v3186, 7
        %v3188 = vsub.s32 0, %v3187
        %v3189 = vrot.slane %v3082, %v3188
        %v3190 = vlaneseq
        %v3191 = vshrl.u32 %v3190, 7
        %v3192 = vsub.s32 0, %v3191
        %v3193 = vrot.slane %v3083, %v3192
        %v3194 = vlaneseq
        %v3195 = vshrl.u32 %v3194, 7
        %v3196 = vsub.s32 0, %v3195
        %v3197 = vrot.slane %v3084, %v3196
        %v3198 = vlaneseq
        %v3199 = vshrl.u32 %v3198, 7
        %v3200 = vsub.s32 0, %v3199
        %v3201 = vrot.slane %v3085, %v3200
        %v3202 = vlaneseq
        %v3203 = vshrl.u32 %v3202, 7
        %v3204 = vsub.s32 0, %v3203
        %v3205 = vrot.slane %v3086, %v3204
        %v3206 = vlaneseq
        %v3207 = vshrl.u32 %v3206, 7
        %v3208 = vsub.s32 0, %v3207
        %v3209 = vrot.slane %v3087, %v3208
        %v3210 = vlaneseq
        %v3211 = vshrl.u32 %v3210, 7
        %v3212 = vsub.s32 0, %v3211
        %v3213 = vrot.slane %v3088, %v3212
        %v3214 = vlaneseq
        %v3215 = vshrl.u32 %v3214, 7
        %v3216 = vsub.s32 0, %v3215
        %v3217 = vrot.slane %v3089, %v3216
        %v3218 = vcombine.low %v3093, %v3093
        %v3220 = vunpack.c.l.s4 1934713408
        %v3221 = vunpack.c.0.s8 %v3220
        %v3222 = vlaneseq
        %v3223 = vshrl.u32 %v3222, 7
        %v3224 = vsub.s32 %v3221, %v3223
        %v3225 = vrot.slane %v3218, %v3224
        %v3226 = vcombine.high %v3225, 0.0
        %v3227 = vcombine.low %v3125, %v3125
        %v3229 = vunpack.c.l.s4 1934713408
        %v3230 = vunpack.c.0.s8 %v3229
        %v3231 = vlaneseq
        %v3232 = vshrl.u32 %v3231, 7
        %v3233 = vsub.s32 %v3230, %v3232
        %v3234 = vrot.slane %v3227, %v3233
        %v3235 = vcombine.high %v3234, 0.0
        %v3236 = vcombine.low %v3157, %v3157
        %v3238 = vunpack.c.l.s4 1934713408
        %v3239 = vunpack.c.0.s8 %v3238
        %v3240 = vlaneseq
        %v3241 = vshrl.u32 %v3240, 7
        %v3242 = vsub.s32 %v3239, %v3241
        %v3243 = vrot.slane %v3236, %v3242
        %v3244 = vcombine.high %v3243, 0.0
        %v3245 = vcombine.low %v3189, %v3189
        %v3247 = vunpack.c.l.s4 1934713408
        %v3248 = vunpack.c.0.s8 %v3247
        %v3249 = vlaneseq
        %v3250 = vshrl.u32 %v3249, 7
        %v3251 = vsub.s32 %v3248, %v3250
        %v3252 = vrot.slane %v3245, %v3251
        %v3253 = vcombine.high %v3252, 0.0
        %v3254 = vcombine.low %v3097, %v3097
        %v3256 = vunpack.c.l.s4 1934713408
        %v3257 = vunpack.c.0.s8 %v3256
        %v3258 = vlaneseq
        %v3259 = vshrl.u32 %v3258, 7
        %v3260 = vsub.s32 %v3257, %v3259
        %v3261 = vrot.slane %v3254, %v3260
        %v3262 = vcombine.high %v3261, 0.0
        %v3263 = vcombine.low %v3129, %v3129
        %v3265 = vunpack.c.l.s4 1934713408
        %v3266 = vunpack.c.0.s8 %v3265
        %v3267 = vlaneseq
        %v3268 = vshrl.u32 %v3267, 7
        %v3269 = vsub.s32 %v3266, %v3268
        %v3270 = vrot.slane %v3263, %v3269
        %v3271 = vcombine.high %v3270, 0.0
        %v3272 = vcombine.low %v3161, %v3161
        %v3274 = vunpack.c.l.s4 1934713408
        %v3275 = vunpack.c.0.s8 %v3274
        %v3276 = vlaneseq
        %v3277 = vshrl.u32 %v3276, 7
        %v3278 = vsub.s32 %v3275, %v3277
        %v3279 = vrot.slane %v3272, %v3278
        %v3280 = vcombine.high %v3279, 0.0
        %v3281 = vcombine.low %v3193, %v3193
        %v3283 = vunpack.c.l.s4 1934713408
        %v3284 = vunpack.c.0.s8 %v3283
        %v3285 = vlaneseq
        %v3286 = vshrl.u32 %v3285, 7
        %v3287 = vsub.s32 %v3284, %v3286
        %v3288 = vrot.slane %v3281, %v3287
        %v3289 = vcombine.high %v3288, 0.0
        %v3290 = vcombine.low %v3101, %v3101
        %v3292 = vunpack.c.l.s4 1934713408
        %v3293 = vunpack.c.0.s8 %v3292
        %v3294 = vlaneseq
        %v3295 = vshrl.u32 %v3294, 7
        %v3296 = vsub.s32 %v3293, %v3295
        %v3297 = vrot.slane %v3290, %v3296
        %v3298 = vcombine.high %v3297, 0.0
        %v3299 = vcombine.low %v3133, %v3133
        %v3301 = vunpack.c.l.s4 1934713408
        %v3302 = vunpack.c.0.s8 %v3301
        %v3303 = vlaneseq
        %v3304 = vshrl.u32 %v3303, 7
        %v3305 = vsub.s32 %v3302, %v3304
        %v3306 = vrot.slane %v3299, %v3305
        %v3307 = vcombine.high %v3306, 0.0
        %v3308 = vcombine.low %v3165, %v3165
        %v3310 = vunpack.c.l.s4 1934713408
        %v3311 = vunpack.c.0.s8 %v3310
        %v3312 = vlaneseq
        %v3313 = vshrl.u32 %v3312, 7
        %v3314 = vsub.s32 %v3311, %v3313
        %v3315 = vrot.slane %v3308, %v3314
        %v3316 = vcombine.high %v3315, 0.0
        %v3317 = vcombine.low %v3197, %v3197
        %v3319 = vunpack.c.l.s4 1934713408
        %v3320 = vunpack.c.0.s8 %v3319
        %v3321 = vlaneseq
        %v3322 = vshrl.u32 %v3321, 7
        %v3323 = vsub.s32 %v3320, %v3322
        %v3324 = vrot.slane %v3317, %v3323
        %v3325 = vcombine.high %v3324, 0.0
        %v3326 = vcombine.low %v3105, %v3105
        %v3328 = vunpack.c.l.s4 1934713408
        %v3329 = vunpack.c.0.s8 %v3328
        %v3330 = vlaneseq
        %v3331 = vshrl.u32 %v3330, 7
        %v3332 = vsub.s32 %v3329, %v3331
        %v3333 = vrot.slane %v3326, %v3332
        %v3334 = vcombine.high %v3333, 0.0
        %v3335 = vcombine.low %v3137, %v3137
        %v3337 = vunpack.c.l.s4 1934713408
        %v3338 = vunpack.c.0.s8 %v3337
        %v3339 = vlaneseq
        %v3340 = vshrl.u32 %v3339, 7
        %v3341 = vsub.s32 %v3338, %v3340
        %v3342 = vrot.slane %v3335, %v3341
        %v3343 = vcombine.high %v3342, 0.0
        %v3344 = vcombine.low %v3169, %v3169
        %v3346 = vunpack.c.l.s4 1934713408
        %v3347 = vunpack.c.0.s8 %v3346
        %v3348 = vlaneseq
        %v3349 = vshrl.u32 %v3348, 7
        %v3350 = vsub.s32 %v3347, %v3349
        %v3351 = vrot.slane %v3344, %v3350
        %v3352 = vcombine.high %v3351, 0.0
        %v3353 = vcombine.low %v3201, %v3201
        %v3355 = vunpack.c.l.s4 1934713408
        %v3356 = vunpack.c.0.s8 %v3355
        %v3357 = vlaneseq
        %v3358 = vshrl.u32 %v3357, 7
        %v3359 = vsub.s32 %v3356, %v3358
        %v3360 = vrot.slane %v3353, %v3359
        %v3361 = vcombine.high %v3360, 0.0
        %v3362 = vcombine.low %v3109, %v3109
        %v3364 = vunpack.c.l.s4 1934713408
        %v3365 = vunpack.c.0.s8 %v3364
        %v3366 = vlaneseq
        %v3367 = vshrl.u32 %v3366, 7
        %v3368 = vsub.s32 %v3365, %v3367
        %v3369 = vrot.slane %v3362, %v3368
        %v3370 = vcombine.high %v3369, 0.0
        %v3371 = vcombine.low %v3141, %v3141
        %v3373 = vunpack.c.l.s4 1934713408
        %v3374 = vunpack.c.0.s8 %v3373
        %v3375 = vlaneseq
        %v3376 = vshrl.u32 %v3375, 7
        %v3377 = vsub.s32 %v3374, %v3376
        %v3378 = vrot.slane %v3371, %v3377
        %v3379 = vcombine.high %v3378, 0.0
        %v3380 = vcombine.low %v3173, %v3173
        %v3382 = vunpack.c.l.s4 1934713408
        %v3383 = vunpack.c.0.s8 %v3382
        %v3384 = vlaneseq
        %v3385 = vshrl.u32 %v3384, 7
        %v3386 = vsub.s32 %v3383, %v3385
        %v3387 = vrot.slane %v3380, %v3386
        %v3388 = vcombine.high %v3387, 0.0
        %v3389 = vcombine.low %v3205, %v3205
        %v3391 = vunpack.c.l.s4 1934713408
        %v3392 = vunpack.c.0.s8 %v3391
        %v3393 = vlaneseq
        %v3394 = vshrl.u32 %v3393, 7
        %v3395 = vsub.s32 %v3392, %v3394
        %v3396 = vrot.slane %v3389, %v3395
        %v3397 = vcombine.high %v3396, 0.0
        %v3398 = vcombine.low %v3113, %v3113
        %v3400 = vunpack.c.l.s4 1934713408
        %v3401 = vunpack.c.0.s8 %v3400
        %v3402 = vlaneseq
        %v3403 = vshrl.u32 %v3402, 7
        %v3404 = vsub.s32 %v3401, %v3403
        %v3405 = vrot.slane %v3398, %v3404
        %v3406 = vcombine.high %v3405, 0.0
        %v3407 = vcombine.low %v3145, %v3145
        %v3409 = vunpack.c.l.s4 1934713408
        %v3410 = vunpack.c.0.s8 %v3409
        %v3411 = vlaneseq
        %v3412 = vshrl.u32 %v3411, 7
        %v3413 = vsub.s32 %v3410, %v3412
        %v3414 = vrot.slane %v3407, %v3413
        %v3415 = vcombine.high %v3414, 0.0
        %v3416 = vcombine.low %v3177, %v3177
        %v3418 = vunpack.c.l.s4 1934713408
        %v3419 = vunpack.c.0.s8 %v3418
        %v3420 = vlaneseq
        %v3421 = vshrl.u32 %v3420, 7
        %v3422 = vsub.s32 %v3419, %v3421
        %v3423 = vrot.slane %v3416, %v3422
        %v3424 = vcombine.high %v3423, 0.0
        %v3425 = vcombine.low %v3209, %v3209
        %v3427 = vunpack.c.l.s4 1934713408
        %v3428 = vunpack.c.0.s8 %v3427
        %v3429 = vlaneseq
        %v3430 = vshrl.u32 %v3429, 7
        %v3431 = vsub.s32 %v3428, %v3430
        %v3432 = vrot.slane %v3425, %v3431
        %v3433 = vcombine.high %v3432, 0.0
        %v3434 = vcombine.low %v3117, %v3117
        %v3436 = vunpack.c.l.s4 1934713408
        %v3437 = vunpack.c.0.s8 %v3436
        %v3438 = vlaneseq
        %v3439 = vshrl.u32 %v3438, 7
        %v3440 = vsub.s32 %v3437, %v3439
        %v3441 = vrot.slane %v3434, %v3440
        %v3442 = vcombine.high %v3441, 0.0
        %v3443 = vcombine.low %v3149, %v3149
        %v3445 = vunpack.c.l.s4 1934713408
        %v3446 = vunpack.c.0.s8 %v3445
        %v3447 = vlaneseq
        %v3448 = vshrl.u32 %v3447, 7
        %v3449 = vsub.s32 %v3446, %v3448
        %v3450 = vrot.slane %v3443, %v3449
        %v3451 = vcombine.high %v3450, 0.0
        %v3452 = vcombine.low %v3181, %v3181
        %v3454 = vunpack.c.l.s4 1934713408
        %v3455 = vunpack.c.0.s8 %v3454
        %v3456 = vlaneseq
        %v3457 = vshrl.u32 %v3456, 7
        %v3458 = vsub.s32 %v3455, %v3457
        %v3459 = vrot.slane %v3452, %v3458
        %v3460 = vcombine.high %v3459, 0.0
        %v3461 = vcombine.low %v3213, %v3213
        %v3463 = vunpack.c.l.s4 1934713408
        %v3464 = vunpack.c.0.s8 %v3463
        %v3465 = vlaneseq
        %v3466 = vshrl.u32 %v3465, 7
        %v3467 = vsub.s32 %v3464, %v3466
        %v3468 = vrot.slane %v3461, %v3467
        %v3469 = vcombine.high %v3468, 0.0
        %v3470 = vcombine.low %v3121, %v3121
        %v3472 = vunpack.c.l.s4 1934713408
        %v3473 = vunpack.c.0.s8 %v3472
        %v3474 = vlaneseq
        %v3475 = vshrl.u32 %v3474, 7
        %v3476 = vsub.s32 %v3473, %v3475
        %v3477 = vrot.slane %v3470, %v3476
        %v3478 = vcombine.high %v3477, 0.0
        %v3479 = vcombine.low %v3153, %v3153
        %v3481 = vunpack.c.l.s4 1934713408
        %v3482 = vunpack.c.0.s8 %v3481
        %v3483 = vlaneseq
        %v3484 = vshrl.u32 %v3483, 7
        %v3485 = vsub.s32 %v3482, %v3484
        %v3486 = vrot.slane %v3479, %v3485
        %v3487 = vcombine.high %v3486, 0.0
        %v3488 = vcombine.low %v3185, %v3185
        %v3490 = vunpack.c.l.s4 1934713408
        %v3491 = vunpack.c.0.s8 %v3490
        %v3492 = vlaneseq
        %v3493 = vshrl.u32 %v3492, 7
        %v3494 = vsub.s32 %v3491, %v3493
        %v3495 = vrot.slane %v3488, %v3494
        %v3496 = vcombine.high %v3495, 0.0
        %v3497 = vcombine.low %v3217, %v3217
        %v3499 = vunpack.c.l.s4 1934713408
        %v3500 = vunpack.c.0.s8 %v3499
        %v3501 = vlaneseq
        %v3502 = vshrl.u32 %v3501, 7
        %v3503 = vsub.s32 %v3500, %v3502
        %v3504 = vrot.slane %v3497, %v3503
        %v3505 = vcombine.high %v3504, 0.0
        %v3510 = vcombine.low %v3225, %v3234
        %v3511 = vcombine.low %v3243, %v3252
        %v3513 = vunpack.c.l.s4 1983009808
        %v3514 = vunpack.c.0.s8 %v3513
        %v3515 = vlaneseq
        %v3516 = vshrl.u32 %v3515, 7
        %v3517 = vsub.s32 %v3514, %v3516
        %v3518 = vrot.slane %v3510, %v3517
        %v3520 = vunpack.c.l.s4 1983009808
        %v3521 = vunpack.c.0.s8 %v3520
        %v3522 = vlaneseq
        %v3523 = vshrl.u32 %v3522, 7
        %v3524 = vsub.s32 %v3521, %v3523
        %v3525 = vrot.slane %v3511, %v3524
        %v3526 = vcombine.low %v3518, %v3525
        %v3532 = vcombine.low %v3226, %v3235
        %v3533 = vcombine.low %v3244, %v3253
        %v3535 = vunpack.c.l.s4 1983009808
        %v3536 = vunpack.c.0.s8 %v3535
        %v3537 = vlaneseq
        %v3538 = vshrl.u32 %v3537, 7
        %v3539 = vsub.s32 %v3536, %v3538
        %v3540 = vrot.slane %v3532, %v3539
        %v3542 = vunpack.c.l.s4 1983009808
        %v3543 = vunpack.c.0.s8 %v3542
        %v3544 = vlaneseq
        %v3545 = vshrl.u32 %v3544, 7
        %v3546 = vsub.s32 %v3543, %v3545
        %v3547 = vrot.slane %v3533, %v3546
        %v3548 = vcombine.low %v3540, %v3547
        %3549 = vrot.lane.b32.xlu0 %v3548, 16
        %v3550 = vpop.permute.xlu0 %3549
        %v3556 = vcombine.low %v3261, %v3270
        %v3557 = vcombine.low %v3279, %v3288
        %v3559 = vunpack.c.l.s4 1983009808
        %v3560 = vunpack.c.0.s8 %v3559
        %v3561 = vlaneseq
        %v3562 = vshrl.u32 %v3561, 7
        %v3563 = vsub.s32 %v3560, %v3562
        %v3564 = vrot.slane %v3556, %v3563
        %v3566 = vunpack.c.l.s4 1983009808
        %v3567 = vunpack.c.0.s8 %v3566
        %v3568 = vlaneseq
        %v3569 = vshrl.u32 %v3568, 7
        %v3570 = vsub.s32 %v3567, %v3569
        %v3571 = vrot.slane %v3557, %v3570
        %v3572 = vcombine.low %v3564, %v3571
        %3573 = vrot.lane.b32.xlu0 %v3572, 32
        %v3574 = vpop.permute.xlu0 %3573
        %v3580 = vcombine.low %v3262, %v3271
        %v3581 = vcombine.low %v3280, %v3289
        %v3583 = vunpack.c.l.s4 1983009808
        %v3584 = vunpack.c.0.s8 %v3583
        %v3585 = vlaneseq
        %v3586 = vshrl.u32 %v3585, 7
        %v3587 = vsub.s32 %v3584, %v3586
        %v3588 = vrot.slane %v3580, %v3587
        %v3590 = vunpack.c.l.s4 1983009808
        %v3591 = vunpack.c.0.s8 %v3590
        %v3592 = vlaneseq
        %v3593 = vshrl.u32 %v3592, 7
        %v3594 = vsub.s32 %v3591, %v3593
        %v3595 = vrot.slane %v3581, %v3594
        %v3596 = vcombine.low %v3588, %v3595
        %3597 = vrot.lane.b32.xlu0 %v3596, 48
        %v3598 = vpop.permute.xlu0 %3597
        %v3604 = vcombine.low %v3297, %v3306
        %v3605 = vcombine.low %v3315, %v3324
        %v3607 = vunpack.c.l.s4 1983009808
        %v3608 = vunpack.c.0.s8 %v3607
        %v3609 = vlaneseq
        %v3610 = vshrl.u32 %v3609, 7
        %v3611 = vsub.s32 %v3608, %v3610
        %v3612 = vrot.slane %v3604, %v3611
        %v3614 = vunpack.c.l.s4 1983009808
        %v3615 = vunpack.c.0.s8 %v3614
        %v3616 = vlaneseq
        %v3617 = vshrl.u32 %v3616, 7
        %v3618 = vsub.s32 %v3615, %v3617
        %v3619 = vrot.slane %v3605, %v3618
        %v3620 = vcombine.low %v3612, %v3619
        %3621 = vrot.lane.b32.xlu0 %v3620, 64
        %v3622 = vpop.permute.xlu0 %3621
        %v3628 = vcombine.low %v3298, %v3307
        %v3629 = vcombine.low %v3316, %v3325
        %v3631 = vunpack.c.l.s4 1983009808
        %v3632 = vunpack.c.0.s8 %v3631
        %v3633 = vlaneseq
        %v3634 = vshrl.u32 %v3633, 7
        %v3635 = vsub.s32 %v3632, %v3634
        %v3636 = vrot.slane %v3628, %v3635
        %v3638 = vunpack.c.l.s4 1983009808
        %v3639 = vunpack.c.0.s8 %v3638
        %v3640 = vlaneseq
        %v3641 = vshrl.u32 %v3640, 7
        %v3642 = vsub.s32 %v3639, %v3641
        %v3643 = vrot.slane %v3629, %v3642
        %v3644 = vcombine.low %v3636, %v3643
        %3645 = vrot.lane.b32.xlu0 %v3644, 80
        %v3646 = vpop.permute.xlu0 %3645
        %v3652 = vcombine.low %v3333, %v3342
        %v3653 = vcombine.low %v3351, %v3360
        %v3655 = vunpack.c.l.s4 1983009808
        %v3656 = vunpack.c.0.s8 %v3655
        %v3657 = vlaneseq
        %v3658 = vshrl.u32 %v3657, 7
        %v3659 = vsub.s32 %v3656, %v3658
        %v3660 = vrot.slane %v3652, %v3659
        %v3662 = vunpack.c.l.s4 1983009808
        %v3663 = vunpack.c.0.s8 %v3662
        %v3664 = vlaneseq
        %v3665 = vshrl.u32 %v3664, 7
        %v3666 = vsub.s32 %v3663, %v3665
        %v3667 = vrot.slane %v3653, %v3666
        %v3668 = vcombine.low %v3660, %v3667
        %3669 = vrot.lane.b32.xlu0 %v3668, 96
        %v3670 = vpop.permute.xlu0 %3669
        %v3676 = vcombine.low %v3334, %v3343
        %v3677 = vcombine.low %v3352, %v3361
        %v3679 = vunpack.c.l.s4 1983009808
        %v3680 = vunpack.c.0.s8 %v3679
        %v3681 = vlaneseq
        %v3682 = vshrl.u32 %v3681, 7
        %v3683 = vsub.s32 %v3680, %v3682
        %v3684 = vrot.slane %v3676, %v3683
        %v3686 = vunpack.c.l.s4 1983009808
        %v3687 = vunpack.c.0.s8 %v3686
        %v3688 = vlaneseq
        %v3689 = vshrl.u32 %v3688, 7
        %v3690 = vsub.s32 %v3687, %v3689
        %v3691 = vrot.slane %v3677, %v3690
        %v3692 = vcombine.low %v3684, %v3691
        %3693 = vrot.lane.b32.xlu0 %v3692, 112
        %v3694 = vpop.permute.xlu0 %3693
        %v3700 = vcombine.low %v3369, %v3378
        %v3701 = vcombine.low %v3387, %v3396
        %v3703 = vunpack.c.l.s4 1983009808
        %v3704 = vunpack.c.0.s8 %v3703
        %v3705 = vlaneseq
        %v3706 = vshrl.u32 %v3705, 7
        %v3707 = vsub.s32 %v3704, %v3706
        %v3708 = vrot.slane %v3700, %v3707
        %v3710 = vunpack.c.l.s4 1983009808
        %v3711 = vunpack.c.0.s8 %v3710
        %v3712 = vlaneseq
        %v3713 = vshrl.u32 %v3712, 7
        %v3714 = vsub.s32 %v3711, %v3713
        %v3715 = vrot.slane %v3701, %v3714
        %v3716 = vcombine.low %v3708, %v3715
        %v3722 = vcombine.low %v3370, %v3379
        %v3723 = vcombine.low %v3388, %v3397
        %v3725 = vunpack.c.l.s4 1983009808
        %v3726 = vunpack.c.0.s8 %v3725
        %v3727 = vlaneseq
        %v3728 = vshrl.u32 %v3727, 7
        %v3729 = vsub.s32 %v3726, %v3728
        %v3730 = vrot.slane %v3722, %v3729
        %v3732 = vunpack.c.l.s4 1983009808
        %v3733 = vunpack.c.0.s8 %v3732
        %v3734 = vlaneseq
        %v3735 = vshrl.u32 %v3734, 7
        %v3736 = vsub.s32 %v3733, %v3735
        %v3737 = vrot.slane %v3723, %v3736
        %v3738 = vcombine.low %v3730, %v3737
        %3739 = vrot.lane.b32.xlu0 %v3738, 16
        %v3740 = vpop.permute.xlu0 %3739
        %v3746 = vcombine.low %v3405, %v3414
        %v3747 = vcombine.low %v3423, %v3432
        %v3749 = vunpack.c.l.s4 1983009808
        %v3750 = vunpack.c.0.s8 %v3749
        %v3751 = vlaneseq
        %v3752 = vshrl.u32 %v3751, 7
        %v3753 = vsub.s32 %v3750, %v3752
        %v3754 = vrot.slane %v3746, %v3753
        %v3756 = vunpack.c.l.s4 1983009808
        %v3757 = vunpack.c.0.s8 %v3756
        %v3758 = vlaneseq
        %v3759 = vshrl.u32 %v3758, 7
        %v3760 = vsub.s32 %v3757, %v3759
        %v3761 = vrot.slane %v3747, %v3760
        %v3762 = vcombine.low %v3754, %v3761
        %3763 = vrot.lane.b32.xlu0 %v3762, 32
        %v3764 = vpop.permute.xlu0 %3763
        %v3770 = vcombine.low %v3406, %v3415
        %v3771 = vcombine.low %v3424, %v3433
        %v3773 = vunpack.c.l.s4 1983009808
        %v3774 = vunpack.c.0.s8 %v3773
        %v3775 = vlaneseq
        %v3776 = vshrl.u32 %v3775, 7
        %v3777 = vsub.s32 %v3774, %v3776
        %v3778 = vrot.slane %v3770, %v3777
        %v3780 = vunpack.c.l.s4 1983009808
        %v3781 = vunpack.c.0.s8 %v3780
        %v3782 = vlaneseq
        %v3783 = vshrl.u32 %v3782, 7
        %v3784 = vsub.s32 %v3781, %v3783
        %v3785 = vrot.slane %v3771, %v3784
        %v3786 = vcombine.low %v3778, %v3785
        %3787 = vrot.lane.b32.xlu0 %v3786, 48
        %v3788 = vpop.permute.xlu0 %3787
        %v3794 = vcombine.low %v3441, %v3450
        %v3795 = vcombine.low %v3459, %v3468
        %v3797 = vunpack.c.l.s4 1983009808
        %v3798 = vunpack.c.0.s8 %v3797
        %v3799 = vlaneseq
        %v3800 = vshrl.u32 %v3799, 7
        %v3801 = vsub.s32 %v3798, %v3800
        %v3802 = vrot.slane %v3794, %v3801
        %v3804 = vunpack.c.l.s4 1983009808
        %v3805 = vunpack.c.0.s8 %v3804
        %v3806 = vlaneseq
        %v3807 = vshrl.u32 %v3806, 7
        %v3808 = vsub.s32 %v3805, %v3807
        %v3809 = vrot.slane %v3795, %v3808
        %v3810 = vcombine.low %v3802, %v3809
        %3811 = vrot.lane.b32.xlu0 %v3810, 64
        %v3812 = vpop.permute.xlu0 %3811
        %v3818 = vcombine.low %v3442, %v3451
        %v3819 = vcombine.low %v3460, %v3469
        %v3821 = vunpack.c.l.s4 1983009808
        %v3822 = vunpack.c.0.s8 %v3821
        %v3823 = vlaneseq
        %v3824 = vshrl.u32 %v3823, 7
        %v3825 = vsub.s32 %v3822, %v3824
        %v3826 = vrot.slane %v3818, %v3825
        %v3828 = vunpack.c.l.s4 1983009808
        %v3829 = vunpack.c.0.s8 %v3828
        %v3830 = vlaneseq
        %v3831 = vshrl.u32 %v3830, 7
        %v3832 = vsub.s32 %v3829, %v3831
        %v3833 = vrot.slane %v3819, %v3832
        %v3834 = vcombine.low %v3826, %v3833
        %3835 = vrot.lane.b32.xlu0 %v3834, 80
        %v3836 = vpop.permute.xlu0 %3835
        %v3842 = vcombine.low %v3477, %v3486
        %v3843 = vcombine.low %v3495, %v3504
        %v3845 = vunpack.c.l.s4 1983009808
        %v3846 = vunpack.c.0.s8 %v3845
        %v3847 = vlaneseq
        %v3848 = vshrl.u32 %v3847, 7
        %v3849 = vsub.s32 %v3846, %v3848
        %v3850 = vrot.slane %v3842, %v3849
        %v3852 = vunpack.c.l.s4 1983009808
        %v3853 = vunpack.c.0.s8 %v3852
        %v3854 = vlaneseq
        %v3855 = vshrl.u32 %v3854, 7
        %v3856 = vsub.s32 %v3853, %v3855
        %v3857 = vrot.slane %v3843, %v3856
        %v3858 = vcombine.low %v3850, %v3857
        %3859 = vrot.lane.b32.xlu0 %v3858, 96
        %v3860 = vpop.permute.xlu0 %3859
        %v3866 = vcombine.low %v3478, %v3487
        %v3867 = vcombine.low %v3496, %v3505
        %v3869 = vunpack.c.l.s4 1983009808
        %v3870 = vunpack.c.0.s8 %v3869
        %v3871 = vlaneseq
        %v3872 = vshrl.u32 %v3871, 7
        %v3873 = vsub.s32 %v3870, %v3872
        %v3874 = vrot.slane %v3866, %v3873
        %v3876 = vunpack.c.l.s4 1983009808
        %v3877 = vunpack.c.0.s8 %v3876
        %v3878 = vlaneseq
        %v3879 = vshrl.u32 %v3878, 7
        %v3880 = vsub.s32 %v3877, %v3879
        %v3881 = vrot.slane %v3867, %v3880
        %v3882 = vcombine.low %v3874, %v3881
        %3883 = vrot.lane.b32.xlu0 %v3882, 112
        %v3884 = vpop.permute.xlu0 %3883
        %vm3886 = vcmask 130048
        %v3887 = vsel %vm3886, %v3526, %v3550
        %vm3888 = vcmask 261120
        %v3889 = vsel %vm3888, %v3887, %v3574
        %vm3890 = vcmask 392192
        %v3891 = vsel %vm3890, %v3889, %v3598
        %vm3892 = vcmask 523264
        %v3893 = vsel %vm3892, %v3891, %v3622
        %vm3894 = vcmask 654336
        %v3895 = vsel %vm3894, %v3893, %v3646
        %vm3896 = vcmask 785408
        %v3897 = vsel %vm3896, %v3895, %v3670
        %vm3898 = vcmask 916480
        %v3899 = vsel %vm3898, %v3897, %v3694
        %v3900 = vsel %vm3886, %v3716, %v3740
        %v3901 = vsel %vm3888, %v3900, %v3764
        %v3902 = vsel %vm3890, %v3901, %v3788
        %v3903 = vsel %vm3892, %v3902, %v3812
        %v3904 = vsel %vm3894, %v3903, %v3836
        %v3905 = vsel %vm3896, %v3904, %v3860
        %v3906 = vsel %vm3898, %v3905, %v3884
        %3907 = vst [vmem:[%s165] sm:$0xff] %v3899
        %3908 = vst [vmem:[%s165 + $0x8] sm:$0xff] %v3906
        %s3909 = sand.u32 %s79, 1
        %s3910 = scalar_lea.sflag [#allocation4], %s3909
        %s3911 = sand.u32 %s79, 1
        %s3912 = smul.addr %s3911, 16
        %s3913 = scalar_lea.vmem [#allocation5], %s3912
        // Predicated region
        $region29: #{tpu_custom_call.1} parent=23 // pred_check
          %p3914 = pneg %p89
        $region30: #{tpu_custom_call.1} parent=23 // pred_check_branch
          %3916 = sbr.rel (%p3914) target = $region32
        $region31: #{tpu_custom_call.1} parent=23 // pred_region
          %s3918 = ssub.s32 256, 256
          %3919 = vsyncadd %s3910, %s3918
          %s3920 = smul.addr %s25, 2
          %s3921 = smul.addr %s24, 2
          %s3922 = sadd.s32 %s3920, %s3921
          %s3923 = smul.addr %s23, 8
          %s3924 = sadd.s32 %s3922, %s3923
          %s3925 = smul.addr %s3924, 128
          %s3926 = scalar_lea.hbm %s1, %s3925
          %s3928 = sshll.u32 %s3913, 4
          %s3929 = int_to_ptr.vmem [resolvable:$true] %s3928
          %3931 = dma.vmem_to_hbm [thread:$0]  %s3929, 256, %s3926, %s3910
        $region32: #{tpu_custom_call.1} parent=23 // pred_fallthru
          _
      $region24: #{tpu_custom_call.1} parent=5 // pred_fallthru
        _
      %p3932 = scmp.le.s32.totalorder 2, %s13
      // Predicated region
      $region33: #{tpu_custom_call.1} parent=5 // pred_check
        %p3933 = pneg %p3932
      $region34: #{tpu_custom_call.1} parent=5 // pred_check_branch
        %3935 = sbr.rel (%p3933) target = $region36
      $region35: #{tpu_custom_call.1} parent=5 // pred_region
        %s3936 = ssub.s32 %s13, 2
        // Predicated region
        $region37: #{tpu_custom_call.1} parent=35 // pred_check
          %p3937 = pneg %p95
        $region38: #{tpu_custom_call.1} parent=35 // pred_check_branch
          %3939 = sbr.rel (%p3937) target = $region40
        $region39: #{tpu_custom_call.1} parent=35 // pred_region
          %s3940 = sand.u32 %s80, 1
          %s3941 = scalar_lea.sflag [#allocation4], %s3940
          %s3942 = sand.u32 %s80, 1
          %s3943 = smul.addr %s3942, 16
          %s3944 = scalar_lea.vmem [#allocation5], %s3943
          %3945 = dma.done %s3941, 256
        $region40: #{tpu_custom_call.1} parent=35 // pred_fallthru
          _
      $region36: #{tpu_custom_call.1} parent=5 // pred_fallthru
        _
    $region6: #{tpu_custom_call.1} parent=1 // loop_footer
      %s17 = sadd.s32 1, %s13
    $region7: #{tpu_custom_call.1} parent=1 // loop_footer_branch
      %12 = sbr.rel target = $region3
    $region8: #{tpu_custom_call.1} parent=1 // loop_exit
      _
    %3946 = vsyncpa [#allocation3], 1
    %s3947 = scalar_lea.sflag [#allocation3], 1
    %3948 = vsyncpa %s3947, 1
    %3949 = vsyncpa [#allocation4], 1
    %s3950 = scalar_lea.sflag [#allocation4], 1
    %3951 = vsyncpa %s3950, 1

</llo_original>
